<compile_context>
chip_gen: v5e
topology: v5e:2x2
jax: 0.10.0
libtpu: 0.0.40
codegen_flags: <defaults>
</compile_context>

<pallas_src>
import functools
import math

import jax
import jax.numpy as jnp
from jax import lax
from jax.experimental import pallas as pl
from jax.experimental.pallas import tpu as pltpu


NEG_INF = -1e30  # finite: padded / masked rows must not turn into NaN


def _round_up(n, m):
    return ((n + m - 1) // m) * m


def _flash_causal_kernel(xq_ref, xkv_ref, wq_ref, wkv_ref, o_ref,
                         q_sc, m_sc, l_sc, acc_sc, *, scale, d_out_p):
    qi = pl.program_id(1)   # query-tile index
    ki = pl.program_id(2)   # kv-tile index (reduction axis)

    @pl.when(ki == 0)
    def _init():
        # Q projection for this query tile, computed once per tile; the
        # 1/sqrt(d_out) scale is folded into q before the QK^T matmul.
        q = lax.dot_general(xq_ref[...], wq_ref[...],
                            (((1,), (0,)), ((), ())),
                            preferred_element_type=jnp.float32)
        q_sc[...] = (q * scale).astype(q_sc.dtype)
        m_sc[...] = jnp.full_like(m_sc, NEG_INF)
        l_sc[...] = jnp.zeros_like(l_sc)
        acc_sc[...] = jnp.zeros_like(acc_sc)

    # Block-level causal skip: with TQ == TK, KV blocks with ki > qi are fully
    # above the diagonal and contribute nothing.
    @pl.when(ki <= qi)
    def _compute():
        # Fused K|V projection: one wide matmul, lane-aligned slices.
        kv = lax.dot_general(xkv_ref[...], wkv_ref[...],
                             (((1,), (0,)), ((), ())),
                             preferred_element_type=jnp.float32)
        k = kv[:, :d_out_p].astype(jnp.bfloat16)
        v = kv[:, d_out_p:].astype(jnp.bfloat16)

        q = q_sc[...]
        # scores: contract the feature axis of q and k directly (no transpose).
        s = lax.dot_general(q, k, (((1,), (1,)), ((), ())),
                            preferred_element_type=jnp.float32)

        # Causal mask: only the diagonal block has masked entries; on
        # off-diagonal blocks the predicate is all-False.
        tq, tk = s.shape
        row = lax.broadcasted_iota(jnp.int32, (tq, tk), 0)
        col = lax.broadcasted_iota(jnp.int32, (tq, tk), 1)
        s = jnp.where((ki == qi) & (col > row), NEG_INF, s)

        # Online (flash) softmax update, all in f32.
        m_prev = m_sc[...]
        m_new = jnp.maximum(m_prev, s.max(axis=-1, keepdims=True))
        alpha = jnp.exp(m_prev - m_new)
        p = jnp.exp(s - m_new)
        l_sc[...] = alpha * l_sc[...] + p.sum(axis=-1, keepdims=True)
        acc_sc[...] = alpha * acc_sc[...] + lax.dot_general(
            p.astype(jnp.bfloat16), v, (((1,), (0,)), ((), ())),
            preferred_element_type=jnp.float32)
        m_sc[...] = m_new

        # The diagonal block is the last KV block this query tile touches.
        @pl.when(ki == qi)
        def _finalize():
            inv_l = pl.reciprocal(l_sc[...], approx=True)
            o_ref[...] = (acc_sc[...] * inv_l).astype(o_ref.dtype)


def causal_attention(x, w_query, w_key, w_value, *, block_q=128, block_k=128):
    """x: (B, T, d_in) f32; w_*: (d_out, d_in) PyTorch nn.Linear layout."""
    assert block_q == block_k, "diagonal-block causal logic assumes TQ == TK"
    B, T, d_in = x.shape
    d_out = w_query.shape[0]
    scale = 1.0 / math.sqrt(d_out)   # keys.shape[-1] ** 0.5 in the reference

    # Lane-dense padding: feature dims to multiples of 128, T to a tile multiple.
    d_in_p = _round_up(d_in, 128)
    d_out_p = _round_up(d_out, 128)
    t_p = _round_up(T, block_q)

    def pad_to(a, shape):
        return jnp.pad(a, [(0, s - d) for d, s in zip(a.shape, shape)])

    # bf16 MXU operands (accumulation happens in f32 inside the kernel).
    x_p = pad_to(x.astype(jnp.bfloat16), (B, t_p, d_in_p))
    wq_t = pad_to(w_query.T.astype(jnp.bfloat16), (d_in_p, d_out_p))
    wk_t = pad_to(w_key.T.astype(jnp.bfloat16), (d_in_p, d_out_p))
    wv_t = pad_to(w_value.T.astype(jnp.bfloat16), (d_in_p, d_out_p))
    wkv_t = jnp.concatenate([wk_t, wv_t], axis=1)       # (d_in_p, 2*d_out_p)

    n_q = t_p // block_q
    n_k = t_p // block_k
    grid = (B, n_q, n_k)

    kernel = functools.partial(_flash_causal_kernel,
                               scale=scale, d_out_p=d_out_p)

    out_p = pl.pallas_call(
        kernel,
        out_shape=jax.ShapeDtypeStruct((B, t_p, d_out_p), jnp.float32),
        grid_spec=pltpu.PrefetchScalarGridSpec(
            num_scalar_prefetch=0,
            grid=grid,
            in_specs=[
                # x for the query tile
                pl.BlockSpec((pl.Squeezed(), block_q, d_in_p),
                             lambda b, qi, ki: (b, qi, 0)),
                # x for the key/value tile
                pl.BlockSpec((pl.Squeezed(), block_k, d_in_p),
                             lambda b, qi, ki: (b, ki, 0)),
                # pre-transposed Q weight (d_in_p, d_out_p)
                pl.BlockSpec((d_in_p, d_out_p), lambda b, qi, ki: (0, 0)),
                # fused, pre-transposed K|V weight (d_in_p, 2*d_out_p)
                pl.BlockSpec((d_in_p, 2 * d_out_p), lambda b, qi, ki: (0, 0)),
            ],
            out_specs=pl.BlockSpec((pl.Squeezed(), block_q, d_out_p),
                                   lambda b, qi, ki: (b, qi, 0)),
            scratch_shapes=[
                pltpu.VMEM((block_q, d_out_p), jnp.bfloat16),   # q tile
                pltpu.VMEM((block_q, 1), jnp.float32),          # running max
                pltpu.VMEM((block_q, 1), jnp.float32),          # running denom
                pltpu.VMEM((block_q, d_out_p), jnp.float32),    # output acc
            ]),
        compiler_params=pltpu.CompilerParams(
            dimension_semantics=("parallel", "parallel", "arbitrary"),
            vmem_limit_bytes=32 * 1024 * 1024),
    )(x_p, x_p, wq_t, wkv_t)

    # Strip sequence / feature padding.
    return out_p[:, :T, :d_out]


def reference_attention(x, w_query, w_key, w_value):
    """Pure-JAX f32 reference matching the PyTorch forward (dropout p=0)."""
    q = jnp.einsum("btd,od->bto", x, w_query)
    k = jnp.einsum("btd,od->bto", x, w_key)
    v = jnp.einsum("btd,od->bto", x, w_value)
    scores = jnp.einsum("bqo,bko->bqk", q, k)
    T = x.shape[1]
    mask = jnp.triu(jnp.ones((T, T), dtype=bool), k=1)
    scores = jnp.where(mask[None], -jnp.inf, scores)
    w = jax.nn.softmax(scores / math.sqrt(k.shape[-1]), axis=-1)
    return jnp.einsum("bqk,bko->bqo", w, v)


if __name__ == "__main__":
    # Inputs exactly as in the PyTorch script: 6 tokens of dim 3, stacked to B=2.
    inputs = jnp.array(
        [[0.43, 0.15, 0.89],
         [0.55, 0.87, 0.66],
         [0.57, 0.85, 0.64],
         [0.22, 0.58, 0.33],
         [0.77, 0.25, 0.10],
         [0.05, 0.80, 0.55]], dtype=jnp.float32)
    x = jnp.stack([inputs, inputs], axis=0)          # (2, 6, 3)

    d_in = x.shape[-1]
    d_out = 3

    # Deterministic parameter init (like nn.Linear: U(-1/sqrt(d_in), 1/sqrt(d_in)))
    key = jax.random.PRNGKey(0)
    kq, kk, kv = jax.random.split(key, 3)
    bound = 1.0 / math.sqrt(d_in)
    w_query = jax.random.uniform(kq, (d_out, d_in), jnp.float32, -bound, bound)
    w_key = jax.random.uniform(kk, (d_out, d_in), jnp.float32, -bound, bound)
    w_value = jax.random.uniform(kv, (d_out, d_in), jnp.float32, -bound, bound)

    out = causal_attention(x, w_query, w_key, w_value)
    out = jax.block_until_ready(out)

    ref = reference_attention(x, w_query, w_key, w_value)
    assert out.shape == (2, 6, 3), out.shape
    # bf16 MXU operands with f32 accumulation -> compare with a loose tolerance.
    assert jnp.allclose(out, ref, atol=2e-2, rtol=2e-2), (out, ref)

    print("KERNEL_OK")
</pallas_src>

<mosaic_0001>
module attributes {stable_mosaic.version = 11 : i64} {
  func.func @_flash_causal_kernel(%arg0: i32, %arg1: i32, %arg2: i32, %arg3: memref<1x128x128xbf16, #tpu.memory_space<vmem>>, %arg4: memref<1x128x128xbf16, #tpu.memory_space<vmem>>, %arg5: memref<128x128xbf16, #tpu.memory_space<vmem>>, %arg6: memref<128x256xbf16, #tpu.memory_space<vmem>>, %arg7: memref<1x128x128xf32, #tpu.memory_space<vmem>>, %arg8: memref<128x128xbf16, #tpu.memory_space<vmem>>, %arg9: memref<128x1xf32, #tpu.memory_space<vmem>>, %arg10: memref<128x1xf32, #tpu.memory_space<vmem>>, %arg11: memref<128x128xf32, #tpu.memory_space<vmem>>) attributes {dimension_semantics = [#tpu.dimension_semantics<parallel>, #tpu.dimension_semantics<parallel>, #tpu.dimension_semantics<arbitrary>], iteration_bounds = array<i64: 2, 1, 1>, scalar_prefetch = 0 : i64, scratch_operands = 4 : i64, tpu.core_type = #tpu.core_type<tc>, window_params = [{transform_indices = @transform_0, window_bounds = array<i64: 1, 128, 128>}, {transform_indices = @transform_1, window_bounds = array<i64: 1, 128, 128>}, {pipeline_mode = #tpu.pipeline_mode<synchronous>, transform_indices = @transform_2, window_bounds = array<i64: 128, 128>}, {pipeline_mode = #tpu.pipeline_mode<synchronous>, transform_indices = @transform_3, window_bounds = array<i64: 128, 256>}, {transform_indices = @transform_4, window_bounds = array<i64: 1, 128, 128>}]} {
    %c0_i32 = arith.constant 0 : i32
    %0 = arith.cmpi eq, %arg2, %c0_i32 : i32
    %1 = arith.extui %0 : i1 to i32
    %c0_i32_0 = arith.constant 0 : i32
    %2 = arith.cmpi ne, %1, %c0_i32_0 : i32
    scf.if %2 {
      %c0 = arith.constant 0 : index
      %c0_2 = arith.constant 0 : index
      %c0_3 = arith.constant 0 : index
      %6 = vector.load %arg3[%c0, %c0_2, %c0_3] : memref<1x128x128xbf16, #tpu.memory_space<vmem>>, vector<1x128x128xbf16>
      %7 = vector.shape_cast %6 : vector<1x128x128xbf16> to vector<128x128xbf16>
      %c0_4 = arith.constant 0 : index
      %c0_5 = arith.constant 0 : index
      %8 = vector.load %arg5[%c0_4, %c0_5] : memref<128x128xbf16, #tpu.memory_space<vmem>>, vector<128x128xbf16>
      %cst = arith.constant dense<0.000000e+00> : vector<128x128xf32>
      %9 = tpu.matmul %7, %8, %cst {dimension_numbers = #tpu.dot_dimension_numbers<[1], [0], [0], [1], [0, 0, 1, 1], [], []>} : vector<128x128xbf16>, vector<128x128xbf16>, vector<128x128xf32> -> vector<128x128xf32>
      %cst_6 = arith.constant 0.577350259 : f32
      %10 = vector.broadcast %cst_6 : f32 to vector<128x128xf32>
      %11 = arith.mulf %9, %10 : vector<128x128xf32>
      %12 = arith.truncf %11 : vector<128x128xf32> to vector<128x128xbf16>
      %c0_7 = arith.constant 0 : index
      %c0_8 = arith.constant 0 : index
      %13 = vector.load %arg8[%c0_7, %c0_8] : memref<128x128xbf16, #tpu.memory_space<vmem>>, vector<128x128xbf16>
      tpu.vector_store %arg8[%c0_7, %c0_8], %12 {strides = array<i32>} : memref<128x128xbf16, #tpu.memory_space<vmem>>, vector<128x128xbf16>,
      %cst_9 = arith.constant -1.000000e+30 : f32
      %14 = vector.broadcast %cst_9 : f32 to vector<128x1xf32>
      %c0_10 = arith.constant 0 : index
      %c0_11 = arith.constant 0 : index
      %15 = vector.load %arg9[%c0_10, %c0_11] : memref<128x1xf32, #tpu.memory_space<vmem>>, vector<128x1xf32>
      tpu.vector_store %arg9[%c0_10, %c0_11], %14 {strides = array<i32>} : memref<128x1xf32, #tpu.memory_space<vmem>>, vector<128x1xf32>,
      %cst_12 = arith.constant 0.000000e+00 : f32
      %16 = vector.broadcast %cst_12 : f32 to vector<128x1xf32>
      %c0_13 = arith.constant 0 : index
      %c0_14 = arith.constant 0 : index
      %17 = vector.load %arg10[%c0_13, %c0_14] : memref<128x1xf32, #tpu.memory_space<vmem>>, vector<128x1xf32>
      tpu.vector_store %arg10[%c0_13, %c0_14], %16 {strides = array<i32>} : memref<128x1xf32, #tpu.memory_space<vmem>>, vector<128x1xf32>,
      %cst_15 = arith.constant 0.000000e+00 : f32
      %18 = vector.broadcast %cst_15 : f32 to vector<128x128xf32>
      %c0_16 = arith.constant 0 : index
      %c0_17 = arith.constant 0 : index
      %19 = vector.load %arg11[%c0_16, %c0_17] : memref<128x128xf32, #tpu.memory_space<vmem>>, vector<128x128xf32>
      tpu.vector_store %arg11[%c0_16, %c0_17], %18 {strides = array<i32>} : memref<128x128xf32, #tpu.memory_space<vmem>>, vector<128x128xf32>,
    } else {
    }
    %3 = arith.cmpi sle, %arg2, %arg1 : i32
    %4 = arith.extui %3 : i1 to i32
    %c0_i32_1 = arith.constant 0 : i32
    %5 = arith.cmpi ne, %4, %c0_i32_1 : i32
    scf.if %5 {
      %c0 = arith.constant 0 : index
      %c0_2 = arith.constant 0 : index
      %c0_3 = arith.constant 0 : index
      %6 = vector.load %arg4[%c0, %c0_2, %c0_3] : memref<1x128x128xbf16, #tpu.memory_space<vmem>>, vector<1x128x128xbf16>
      %7 = vector.shape_cast %6 : vector<1x128x128xbf16> to vector<128x128xbf16>
      %c0_4 = arith.constant 0 : index
      %c0_5 = arith.constant 0 : index
      %8 = vector.load %arg6[%c0_4, %c0_5] : memref<128x256xbf16, #tpu.memory_space<vmem>>, vector<128x256xbf16>
      %cst = arith.constant dense<0.000000e+00> : vector<128x256xf32>
      %9 = tpu.matmul %7, %8, %cst {dimension_numbers = #tpu.dot_dimension_numbers<[1], [0], [0], [1], [0, 0, 1, 1], [], []>} : vector<128x128xbf16>, vector<128x256xbf16>, vector<128x256xf32> -> vector<128x256xf32>
      %10 = vector.extract_strided_slice %9 {offsets = [0, 0], sizes = [128, 128], strides = [1, 1]} : vector<128x256xf32> to vector<128x128xf32>
      %11 = arith.truncf %10 : vector<128x128xf32> to vector<128x128xbf16>
      %12 = vector.extract_strided_slice %9 {offsets = [0, 128], sizes = [128, 128], strides = [1, 1]} : vector<128x256xf32> to vector<128x128xf32>
      %13 = arith.truncf %12 : vector<128x128xf32> to vector<128x128xbf16>
      %c0_6 = arith.constant 0 : index
      %c0_7 = arith.constant 0 : index
      %14 = vector.load %arg8[%c0_6, %c0_7] : memref<128x128xbf16, #tpu.memory_space<vmem>>, vector<128x128xbf16>
      %cst_8 = arith.constant dense<0.000000e+00> : vector<128x128xf32>
      %15 = tpu.matmul %14, %11, %cst_8 {dimension_numbers = #tpu.dot_dimension_numbers<[1], [1], [0], [0], [0, 0, 1, 0], [], []>} : vector<128x128xbf16>, vector<128x128xbf16>, vector<128x128xf32> -> vector<128x128xf32>
      %16 = tpu.iota {dimensions = array<i32: 0>} : vector<128x128xi32>
      %17 = tpu.iota {dimensions = array<i32: 1>} : vector<128x128xi32>
      %18 = arith.cmpi eq, %arg2, %arg1 : i32
      %19 = arith.cmpi sgt, %17, %16 : vector<128x128xi32>
      %20 = vector.broadcast %18 : i1 to vector<128x128xi1>
      %21 = arith.andi %20, %19 : vector<128x128xi1>
      %cst_9 = arith.constant -1.000000e+30 : f32
      %22 = vector.broadcast %cst_9 : f32 to vector<128x128xf32>
      %23 = arith.select %21, %22, %15 : vector<128x128xi1>, vector<128x128xf32>
      %c0_10 = arith.constant 0 : index
      %c0_11 = arith.constant 0 : index
      %24 = vector.load %arg9[%c0_10, %c0_11] : memref<128x1xf32, #tpu.memory_space<vmem>>, vector<128x1xf32>
      %cst_12 = arith.constant dense<0xFF800000> : vector<128xf32>
      %25 = vector.multi_reduction <maximumf>, %23, %cst_12 [1] : vector<128x128xf32> to vector<128xf32>
      %26 = vector.shape_cast %25 : vector<128xf32> to vector<128x1xf32>
      %27 = arith.maximumf %24, %26 : vector<128x1xf32>
      %28 = arith.subf %24, %27 : vector<128x1xf32>
      %29 = math.exp %28 : vector<128x1xf32>
      %30 = vector.broadcast %27 : vector<128x1xf32> to vector<128x128xf32>
      %31 = arith.subf %23, %30 : vector<128x128xf32>
      %32 = math.exp %31 : vector<128x128xf32>
      %c0_13 = arith.constant 0 : index
      %c0_14 = arith.constant 0 : index
      %33 = vector.load %arg10[%c0_13, %c0_14] : memref<128x1xf32, #tpu.memory_space<vmem>>, vector<128x1xf32>
      %34 = arith.mulf %29, %33 : vector<128x1xf32>
      %cst_15 = arith.constant dense<0.000000e+00> : vector<128xf32>
      %35 = vector.multi_reduction <add>, %32, %cst_15 [1] : vector<128x128xf32> to vector<128xf32>
      %36 = vector.shape_cast %35 : vector<128xf32> to vector<128x1xf32>
      %37 = arith.addf %34, %36 : vector<128x1xf32>
      %c0_16 = arith.constant 0 : index
      %c0_17 = arith.constant 0 : index
      %38 = vector.load %arg10[%c0_16, %c0_17] : memref<128x1xf32, #tpu.memory_space<vmem>>, vector<128x1xf32>
      tpu.vector_store %arg10[%c0_16, %c0_17], %37 {strides = array<i32>} : memref<128x1xf32, #tpu.memory_space<vmem>>, vector<128x1xf32>,
      %c0_18 = arith.constant 0 : index
      %c0_19 = arith.constant 0 : index
      %39 = vector.load %arg11[%c0_18, %c0_19] : memref<128x128xf32, #tpu.memory_space<vmem>>, vector<128x128xf32>
      %40 = vector.broadcast %29 : vector<128x1xf32> to vector<128x128xf32>
      %41 = arith.mulf %40, %39 : vector<128x128xf32>
      %42 = arith.truncf %32 : vector<128x128xf32> to vector<128x128xbf16>
      %cst_20 = arith.constant dense<0.000000e+00> : vector<128x128xf32>
      %43 = tpu.matmul %42, %13, %cst_20 {dimension_numbers = #tpu.dot_dimension_numbers<[1], [0], [0], [1], [0, 0, 1, 1], [], []>} : vector<128x128xbf16>, vector<128x128xbf16>, vector<128x128xf32> -> vector<128x128xf32>
      %44 = arith.addf %41, %43 : vector<128x128xf32>
      %c0_21 = arith.constant 0 : index
      %c0_22 = arith.constant 0 : index
      %45 = vector.load %arg11[%c0_21, %c0_22] : memref<128x128xf32, #tpu.memory_space<vmem>>, vector<128x128xf32>
      tpu.vector_store %arg11[%c0_21, %c0_22], %44 {strides = array<i32>} : memref<128x128xf32, #tpu.memory_space<vmem>>, vector<128x128xf32>,
      %c0_23 = arith.constant 0 : index
      %c0_24 = arith.constant 0 : index
      %46 = vector.load %arg9[%c0_23, %c0_24] : memref<128x1xf32, #tpu.memory_space<vmem>>, vector<128x1xf32>
      tpu.vector_store %arg9[%c0_23, %c0_24], %27 {strides = array<i32>} : memref<128x1xf32, #tpu.memory_space<vmem>>, vector<128x1xf32>,
      %47 = arith.cmpi eq, %arg2, %arg1 : i32
      %48 = arith.extui %47 : i1 to i32
      %c0_i32_25 = arith.constant 0 : i32
      %49 = arith.cmpi ne, %48, %c0_i32_25 : i32
      scf.if %49 {
        %c0_26 = arith.constant 0 : index
        %c0_27 = arith.constant 0 : index
        %50 = vector.load %arg10[%c0_26, %c0_27] : memref<128x1xf32, #tpu.memory_space<vmem>>, vector<128x1xf32>
        %51 = tpu.reciprocal %50 {approx = true} : vector<128x1xf32> -> vector<128x1xf32>
        %c0_28 = arith.constant 0 : index
        %c0_29 = arith.constant 0 : index
        %52 = vector.load %arg11[%c0_28, %c0_29] : memref<128x128xf32, #tpu.memory_space<vmem>>, vector<128x128xf32>
        %53 = vector.broadcast %51 : vector<128x1xf32> to vector<128x128xf32>
        %54 = arith.mulf %52, %53 : vector<128x128xf32>
        %c0_30 = arith.constant 0 : index
        %c0_31 = arith.constant 0 : index
        %c0_32 = arith.constant 0 : index
        %55 = vector.load %arg7[%c0_30, %c0_31, %c0_32] : memref<1x128x128xf32, #tpu.memory_space<vmem>>, vector<1x128x128xf32>
        %56 = vector.shape_cast %55 : vector<1x128x128xf32> to vector<128x128xf32>
        %57 = vector.shape_cast %54 : vector<128x128xf32> to vector<1x128x128xf32>
        tpu.vector_store %arg7[%c0_30, %c0_31, %c0_32], %57 {strides = array<i32>} : memref<1x128x128xf32, #tpu.memory_space<vmem>>, vector<1x128x128xf32>,
      } else {
      }
    } else {
    }
    return
  }
  func.func @transform_0(%arg0: i32, %arg1: i32, %arg2: i32) -> (i32, i32, i32) {
    %c0_i32 = arith.constant 0 : i32
    %c0_i32_0 = arith.constant 0 : i32
    return %arg0, %arg1, %c0_i32 : i32, i32, i32
  }
  func.func @transform_1(%arg0: i32, %arg1: i32, %arg2: i32) -> (i32, i32, i32) {
    %c0_i32 = arith.constant 0 : i32
    %c0_i32_0 = arith.constant 0 : i32
    return %arg0, %arg2, %c0_i32 : i32, i32, i32
  }
  func.func @transform_2(%arg0: i32, %arg1: i32, %arg2: i32) -> (i32, i32) {
    %c0_i32 = arith.constant 0 : i32
    %c0_i32_0 = arith.constant 0 : i32
    %c0_i32_1 = arith.constant 0 : i32
    return %c0_i32, %c0_i32_0 : i32, i32
  }
  func.func @transform_3(%arg0: i32, %arg1: i32, %arg2: i32) -> (i32, i32) {
    %c0_i32 = arith.constant 0 : i32
    %c0_i32_0 = arith.constant 0 : i32
    %c0_i32_1 = arith.constant 0 : i32
    return %c0_i32, %c0_i32_0 : i32, i32
  }
  func.func @transform_4(%arg0: i32, %arg1: i32, %arg2: i32) -> (i32, i32, i32) {
    %c0_i32 = arith.constant 0 : i32
    %c0_i32_0 = arith.constant 0 : i32
    return %arg0, %arg1, %c0_i32 : i32, i32, i32
  }
}

</mosaic_0001>

<llo_original>
// kernel: tpu_custom_call.1
$region0: #{tpu_custom_call.1}
  #allocation0 [shape = 'u32[]', space=smem, size = 0x4, offset = 0x4, fixed_abs, tag = 'smem constant byte address 0x4 - core index']
  #allocation1 [shape = 'u32[72,128]{1,0:T(1,128)}', space=vmem, size = 0x9000, scoped, tag = 'internal scratch']
  #allocation2 [shape = 'bf16[128,128]{1,0:T(8,128)(2,1)}', space=vmem, size = 0x8000, scoped, tag = 'scratch operand']
  #allocation3 [shape = 'f32[128,1]{1,0:T(8,128)}', space=vmem, size = 0x10000, scoped, tag = 'scratch operand']
  #allocation4 [shape = 'f32[128,1]{1,0:T(8,128)}', space=vmem, size = 0x10000, scoped, tag = 'scratch operand']
  #allocation5 [shape = 'f32[128,128]{1,0:T(8,128)}', space=vmem, size = 0x10000, scoped, tag = 'scratch operand']
  %s0 = inlined_call_operand.hbm [shape: bf16[2,128,128], index: 0, kind: input, shape index: {}]
  %s1 = inlined_call_operand.hbm [shape: bf16[2,128,128], index: 1, kind: input, shape index: {}]
  %s2 = inlined_call_operand.hbm [shape: bf16[128,128], index: 2, kind: input, shape index: {}]
  %s3 = inlined_call_operand.hbm [shape: bf16[128,256], index: 3, kind: input, shape index: {}]
  %s4 = inlined_call_operand.hbm [shape: f32[2,128,128], index: 4, kind: output, shape index: {}]
  %s5 = sld [smem:[#allocation0]]
  $region77: #{tpu_custom_call.1} parent=0
    _
  %s7 = ssub.s32 1, %s5
  %s8 = scalar_select 0, %s7, %s5
  $region1: #{tpu_custom_call.1} parent=0
    #allocation6 [shape = 'u8[65536]{0}', space=vmem, size = 0x10000, scoped, tag = 'input window, operand 0']
    #allocation7 [shape = 's32[2]{0}', space=sflag, size = 0x8, scoped, tag = 'scoped memory for tpu_custom_call.1']
    #allocation8 [shape = 's32[2]{0}', space=sflag, size = 0x8, scoped, tag = 'scoped memory for tpu_custom_call.1']
    #allocation9 [shape = 'u8[65536]{0}', space=vmem, size = 0x10000, scoped, tag = 'input window, operand 1']
    #allocation10 [shape = 's32[2]{0}', space=sflag, size = 0x8, scoped, tag = 'scoped memory for tpu_custom_call.1']
    #allocation11 [shape = 'u8[32768]{0}', space=vmem, size = 0x8000, scoped, tag = 'input window, operand 2, single buffered']
    #allocation12 [shape = 'u8[65536]{0}', space=vmem, size = 0x10000, scoped, tag = 'input window, operand 3, single buffered']
    #allocation13 [shape = 's32[1]{0}', space=sflag, size = 0x4, scoped, tag = 'scoped memory for tpu_custom_call.1']
    #allocation14 [shape = 'u8[131072]{0}', space=vmem, size = 0x20000, scoped, tag = 'output window, operand 0']
    %9 = vsyncpa [#allocation7], 0
    %s10 = scalar_lea.sflag [#allocation7], 1
    %11 = vsyncpa %s10, 0
    %12 = vsyncpa [#allocation10], 0
    %s13 = scalar_lea.sflag [#allocation10], 1
    %14 = vsyncpa %s13, 0
    %15 = vsyncpa [#allocation13], 0
    %16 = vsyncpa [#allocation8], 0
    %s17 = scalar_lea.sflag [#allocation8], 1
    %18 = vsyncpa %s17, 0
    loop: start=0, step=1, limit=4
    $region2: #{tpu_custom_call.1} parent=1 // loop_pre_header
      _
    $region3: #{tpu_custom_call.1} parent=1 // loop_header
      %s20 = sphi 0, %s24
      %p21 = scmp.ge.s32.totalorder %s20, 4
      %s27 = sphi 0, %s46
      %s28 = sphi 0, %s42
      %s29 = sphi 0, %s38
      %s30 = sphi 0, %s27
      %s31 = sphi 0, %s28
      %s32 = sphi 0, %s29
      %s33 = sphi 0, %s30
      %s34 = sphi 0, %s31
      %s35 = sphi 0, %s32
      %s51 = sphi 0, %s53
      %s54 = sphi 0, %s51
      %s55 = sphi 0, %s54
      %s71 = sphi 0, %s55
      %s79 = sphi 0, %s81
      %s82 = sphi 0, %s79
      %s83 = sphi 0, %s82
      %s99 = sphi 0, %s83
      %s103 = sphi 0, %s103
      %s105 = sphi 0, %s103
      %s106 = sphi 0, %s105
      %s120 = sphi 0, %s106
      %s124 = sphi 0, %s124
      %s126 = sphi 0, %s124
      %s127 = sphi 0, %s126
      %s141 = sphi 0, %s127
      %s149 = sphi 0, %s151
      %s152 = sphi 0, %s149
      %s153 = sphi 0, %s152
      %s169 = sphi 0, %s153
    $region4: #{tpu_custom_call.1} parent=1 // loop_header_branch
      %23 = sbr.rel (%p21) target = $region8
    $region5: #{tpu_custom_call.1} parent=1 // loop_body
      %s25 = ssub.s32 %s20, 1
      %s26 = ssub.s32 %s20, 2
      %s36 = sadd.s32 1, %s29
      %p37 = scmp.ge.s32.totalorder %s36, 1
      %s38 = scalar_select %p37, 0, %s36
      %s39 = sadd.s32 1, %s28
      %s40 = scalar_select %p37, %s39, %s28
      %p41 = scmp.ge.s32.totalorder %s40, 1
      %s42 = scalar_select %p41, 0, %s40
      %s43 = sadd.s32 1, %s27
      %s44 = scalar_select %p41, %s43, %s27
      %p45 = scmp.ge.s32.totalorder %s44, 2
      %s46 = scalar_select %p45, 0, %s44
      %s47 = ssub.s32 %s27, %s46
      %s48 = ssub.s32 %s28, %s42
      %s49 = sor.u32 %s47, %s48
      %p50 = scmp.eq.s32.totalorder %s49, 0
      %s52 = sadd.s32 %s51, 1
      %s53 = scalar_select %p50, %s51, %s52
      %p56 = pneg %p50
      %p57 = scmp.eq.s32.totalorder %s20, 1
      %p58 = por %p56, %p57
      %p59 = scmp.ne.s32.totalorder %s51, %s54
      %p60 = scmp.eq.s32.totalorder %s20, 0
      %p61 = por %p59, %p60
      %p62 = scmp.ne.s32.totalorder %s51, %s54
      %p63 = scmp.eq.s32.totalorder %s25, 1
      %p64 = por %p62, %p63
      %p65 = scmp.ne.s32.totalorder %s54, %s55
      %p66 = scmp.eq.s32.totalorder %s25, 0
      %p67 = por %p65, %p66
      %p68 = scmp.ne.s32.totalorder %s54, %s55
      %p69 = scmp.eq.s32.totalorder %s26, 1
      %p70 = por %p68, %p69
      %p72 = scmp.ne.s32.totalorder %s55, %s71
      %p73 = scmp.eq.s32.totalorder %s26, 0
      %p74 = por %p72, %p73
      %s75 = ssub.s32 %s27, %s46
      %s76 = ssub.s32 %s29, %s38
      %s77 = sor.u32 %s75, %s76
      %p78 = scmp.eq.s32.totalorder %s77, 0
      %s80 = sadd.s32 %s79, 1
      %s81 = scalar_select %p78, %s79, %s80
      %p84 = pneg %p78
      %p85 = scmp.eq.s32.totalorder %s20, 1
      %p86 = por %p84, %p85
      %p87 = scmp.ne.s32.totalorder %s79, %s82
      %p88 = scmp.eq.s32.totalorder %s20, 0
      %p89 = por %p87, %p88
      %p90 = scmp.ne.s32.totalorder %s79, %s82
      %p91 = scmp.eq.s32.totalorder %s25, 1
      %p92 = por %p90, %p91
      %p93 = scmp.ne.s32.totalorder %s82, %s83
      %p94 = scmp.eq.s32.totalorder %s25, 0
      %p95 = por %p93, %p94
      %p96 = scmp.ne.s32.totalorder %s82, %s83
      %p97 = scmp.eq.s32.totalorder %s26, 1
      %p98 = por %p96, %p97
      %p100 = scmp.ne.s32.totalorder %s83, %s99
      %p101 = scmp.eq.s32.totalorder %s26, 0
      %p102 = por %p100, %p101
      %s104 = sadd.s32 %s103, 1
      %p107 = scmp.eq.s32.totalorder %s20, 1
      %p108 = scmp.ne.s32.totalorder %s103, %s105
      %p109 = scmp.eq.s32.totalorder %s20, 0
      %p110 = por %p108, %p109
      %p111 = scmp.ne.s32.totalorder %s103, %s105
      %p112 = scmp.eq.s32.totalorder %s25, 1
      %p113 = por %p111, %p112
      %p114 = scmp.ne.s32.totalorder %s105, %s106
      %p115 = scmp.eq.s32.totalorder %s25, 0
      %p116 = por %p114, %p115
      %p117 = scmp.ne.s32.totalorder %s105, %s106
      %p118 = scmp.eq.s32.totalorder %s26, 1
      %p119 = por %p117, %p118
      %p121 = scmp.ne.s32.totalorder %s106, %s120
      %p122 = scmp.eq.s32.totalorder %s26, 0
      %p123 = por %p121, %p122
      %s125 = sadd.s32 %s124, 1
      %p128 = scmp.eq.s32.totalorder %s20, 1
      %p129 = scmp.ne.s32.totalorder %s124, %s126
      %p130 = scmp.eq.s32.totalorder %s20, 0
      %p131 = por %p129, %p130
      %p132 = scmp.ne.s32.totalorder %s124, %s126
      %p133 = scmp.eq.s32.totalorder %s25, 1
      %p134 = por %p132, %p133
      %p135 = scmp.ne.s32.totalorder %s126, %s127
      %p136 = scmp.eq.s32.totalorder %s25, 0
      %p137 = por %p135, %p136
      %p138 = scmp.ne.s32.totalorder %s126, %s127
      %p139 = scmp.eq.s32.totalorder %s26, 1
      %p140 = por %p138, %p139
      %p142 = scmp.ne.s32.totalorder %s127, %s141
      %p143 = scmp.eq.s32.totalorder %s26, 0
      %p144 = por %p142, %p143
      %s145 = ssub.s32 %s27, %s46
      %s146 = ssub.s32 %s28, %s42
      %s147 = sor.u32 %s145, %s146
      %p148 = scmp.eq.s32.totalorder %s147, 0
      %s150 = sadd.s32 %s149, 1
      %s151 = scalar_select %p148, %s149, %s150
      %p154 = pneg %p148
      %p155 = scmp.eq.s32.totalorder %s20, 1
      %p156 = por %p154, %p155
      %p157 = scmp.ne.s32.totalorder %s149, %s152
      %p158 = scmp.eq.s32.totalorder %s20, 0
      %p159 = por %p157, %p158
      %p160 = scmp.ne.s32.totalorder %s149, %s152
      %p161 = scmp.eq.s32.totalorder %s25, 1
      %p162 = por %p160, %p161
      %p163 = scmp.ne.s32.totalorder %s152, %s153
      %p164 = scmp.eq.s32.totalorder %s25, 0
      %p165 = por %p163, %p164
      %p166 = scmp.ne.s32.totalorder %s152, %s153
      %p167 = scmp.eq.s32.totalorder %s26, 1
      %p168 = por %p166, %p167
      %p170 = scmp.ne.s32.totalorder %s153, %s169
      %p171 = scmp.eq.s32.totalorder %s26, 0
      %p172 = por %p170, %p171
      %p173 = scmp.le.s32.totalorder 1, %s20
      %p174 = scmp.lt.s32.totalorder %s20, 3
      %p175 = pnand %p173, %p174
      %p176 = pneg %p175
      // Predicated region
      $region9: #{tpu_custom_call.1} parent=5 // pred_check
        _
      $region10: #{tpu_custom_call.1} parent=5 // pred_check_branch
        %178 = sbr.rel (%p175) target = $region12
      $region11: #{tpu_custom_call.1} parent=5 // pred_region
        %s179 = ssub.s32 %s20, 1
        // Predicated region
        $region13: #{tpu_custom_call.1} parent=11 // pred_check
          %p180 = pneg %p116
        $region14: #{tpu_custom_call.1} parent=11 // pred_check_branch
          %182 = sbr.rel (%p180) target = $region16
        $region15: #{tpu_custom_call.1} parent=11 // pred_region
          %184 = vsyncadd [#allocation10], 0
          %s185 = sshll.u32 %s2, 4
          %s186 = int_to_ptr.hbm [resolvable:$true] %s185
          %s187 = sshll.u32 [#allocation11], 4
          %s188 = int_to_ptr.vmem [resolvable:$true] %s187
          %193 = dma.hbm_to_vmem [thread:$0]  %s186, 1024, %s188, [#allocation10], 64, 64, 4
        $region16: #{tpu_custom_call.1} parent=11 // pred_fallthru
          _
        // Predicated region
        $region17: #{tpu_custom_call.1} parent=11 // pred_check
          %p194 = pneg %p137
        $region18: #{tpu_custom_call.1} parent=11 // pred_check_branch
          %196 = sbr.rel (%p194) target = $region20
        $region19: #{tpu_custom_call.1} parent=11 // pred_region
          %198 = vsyncadd [#allocation13], 0
          %s199 = sshll.u32 %s3, 4
          %s200 = int_to_ptr.hbm [resolvable:$true] %s199
          %s201 = sshll.u32 [#allocation12], 4
          %s202 = int_to_ptr.vmem [resolvable:$true] %s201
          %207 = dma.hbm_to_vmem [thread:$0]  %s200, 2048, %s202, [#allocation13], 128, 128, 8
        $region20: #{tpu_custom_call.1} parent=11 // pred_fallthru
          _
      $region12: #{tpu_custom_call.1} parent=5 // pred_fallthru
        _
      %p208 = scmp.lt.s32.totalorder %s20, 2
      // Predicated region
      $region21: #{tpu_custom_call.1} parent=5 // pred_check
        %p209 = pneg %p208
      $region22: #{tpu_custom_call.1} parent=5 // pred_check_branch
        %211 = sbr.rel (%p209) target = $region24
      $region23: #{tpu_custom_call.1} parent=5 // pred_region
        // Predicated region
        $region25: #{tpu_custom_call.1} parent=23 // pred_check
          %p212 = pneg %p61
        $region26: #{tpu_custom_call.1} parent=23 // pred_check_branch
          %214 = sbr.rel (%p212) target = $region28
        $region27: #{tpu_custom_call.1} parent=23 // pred_region
          %s215 = sand.u32 %s51, 1
          %s216 = scalar_lea.sflag [#allocation7], %s215
          %s217 = sand.u32 %s51, 1
          %s218 = smul.addr %s217, 64
          %s219 = scalar_lea.vmem [#allocation6], %s218
          %s220 = smul.u32 16, %s28
          %222 = vsyncadd %s216, 0
          %s223 = smul.addr %s27, 16
          %s224 = sadd.s32 %s220, %s223
          %s225 = smul.addr %s224, 4
          %s226 = scalar_lea.hbm %s0, %s225
          %s227 = sshll.u32 %s226, 4
          %s228 = int_to_ptr.hbm [resolvable:$true] %s227
          %s229 = sshll.u32 %s219, 4
          %s230 = int_to_ptr.vmem [resolvable:$true] %s229
          %235 = dma.hbm_to_vmem [thread:$0]  %s228, 1024, %s230, %s216, 64, 64, 4
        $region28: #{tpu_custom_call.1} parent=23 // pred_fallthru
          _
        // Predicated region
        $region29: #{tpu_custom_call.1} parent=23 // pred_check
          %p236 = pneg %p89
        $region30: #{tpu_custom_call.1} parent=23 // pred_check_branch
          %238 = sbr.rel (%p236) target = $region32
        $region31: #{tpu_custom_call.1} parent=23 // pred_region
          %s239 = sand.u32 %s20, 1
          %s240 = scalar_lea.sflag [#allocation10], %s239
          %s241 = sand.u32 %s79, 1
          %s242 = smul.addr %s241, 64
          %s243 = scalar_lea.vmem [#allocation9], %s242
          %s244 = smul.u32 16, %s29
          %246 = vsyncadd %s240, 0
          %s247 = smul.addr %s27, 16
          %s248 = sadd.s32 %s244, %s247
          %s249 = smul.addr %s248, 4
          %s250 = scalar_lea.hbm %s1, %s249
          %s251 = sshll.u32 %s250, 4
          %s252 = int_to_ptr.hbm [resolvable:$true] %s251
          %s253 = sshll.u32 %s243, 4
          %s254 = int_to_ptr.vmem [resolvable:$true] %s253
          %259 = dma.hbm_to_vmem [thread:$0]  %s252, 1024, %s254, %s240, 64, 64, 4
        $region32: #{tpu_custom_call.1} parent=23 // pred_fallthru
          _
      $region24: #{tpu_custom_call.1} parent=5 // pred_fallthru
        _
      %p260 = scmp.le.s32.totalorder 1, %s20
      %p261 = scmp.lt.s32.totalorder %s20, 3
      %p262 = pnand %p260, %p261
      %p263 = pneg %p262
      // Predicated region
      $region33: #{tpu_custom_call.1} parent=5 // pred_check
        _
      $region34: #{tpu_custom_call.1} parent=5 // pred_check_branch
        %265 = sbr.rel (%p262) target = $region36
      $region35: #{tpu_custom_call.1} parent=5 // pred_region
        %s266 = ssub.s32 %s20, 1
        %s267 = sand.u32 %s54, 1
        %s268 = scalar_lea.sflag [#allocation7], %s267
        %s269 = sand.u32 %s54, 1
        %s270 = smul.addr %s269, 64
        %s271 = scalar_lea.vmem [#allocation6], %s270
        // Predicated region
        $region37: #{tpu_custom_call.1} parent=35 // pred_check
          %p272 = pneg %p67
        $region38: #{tpu_custom_call.1} parent=35 // pred_check_branch
          %274 = sbr.rel (%p272) target = $region40
        $region39: #{tpu_custom_call.1} parent=35 // pred_region
          %276 = dma.done %s268, 1024
        $region40: #{tpu_custom_call.1} parent=35 // pred_fallthru
          _
        %s277 = sand.u32 %s25, 1
        %s278 = scalar_lea.sflag [#allocation10], %s277
        %s279 = sand.u32 %s82, 1
        %s280 = smul.addr %s279, 64
        %s281 = scalar_lea.vmem [#allocation9], %s280
        // Predicated region
        $region41: #{tpu_custom_call.1} parent=35 // pred_check
          %p282 = pneg %p95
        $region42: #{tpu_custom_call.1} parent=35 // pred_check_branch
          %284 = sbr.rel (%p282) target = $region44
        $region43: #{tpu_custom_call.1} parent=35 // pred_region
          %286 = dma.done %s278, 1024
        $region44: #{tpu_custom_call.1} parent=35 // pred_fallthru
          _
        // Predicated region
        $region45: #{tpu_custom_call.1} parent=35 // pred_check
          %p287 = pneg %p116
        $region46: #{tpu_custom_call.1} parent=35 // pred_check_branch
          %289 = sbr.rel (%p287) target = $region48
        $region47: #{tpu_custom_call.1} parent=35 // pred_region
          %291 = dma.done [#allocation10], 1024
        $region48: #{tpu_custom_call.1} parent=35 // pred_fallthru
          _
        // Predicated region
        $region49: #{tpu_custom_call.1} parent=35 // pred_check
          %p292 = pneg %p137
        $region50: #{tpu_custom_call.1} parent=35 // pred_check_branch
          %294 = sbr.rel (%p292) target = $region52
        $region51: #{tpu_custom_call.1} parent=35 // pred_region
          %296 = dma.done [#allocation13], 2048
        $region52: #{tpu_custom_call.1} parent=35 // pred_fallthru
          _
        %s297 = sand.u32 %s54, 1
        %s298 = scalar_lea.sflag [#allocation7], %s297
        %s299 = sand.u32 %s54, 1
        %s300 = smul.addr %s299, 64
        %s301 = scalar_lea.vmem [#allocation6], %s300
        %p302 = pneg %p67
        %p303 = pneg %p64
        %s304 = sand.u32 %s25, 1
        %s305 = scalar_lea.sflag [#allocation10], %s304
        %s306 = sand.u32 %s82, 1
        %s307 = smul.addr %s306, 64
        %s308 = scalar_lea.vmem [#allocation9], %s307
        %p309 = pneg %p95
        %p310 = pneg %p92
        %p311 = pneg %p116
        %p312 = pneg %p113
        %p313 = pneg %p137
        %p314 = pneg %p134
        %p315 = pneg %p165
        %p316 = pneg %p162
        %s317 = sand.u32 %s152, 1
        %s318 = scalar_lea.sflag [#allocation8], %s317
        %s319 = sand.u32 %s152, 1
        %s320 = smul.addr %s319, 128
        %s321 = scalar_lea.vmem [#allocation14], %s320
        %s322 = smul.u32 16, %s31
        %s323 = smul.u32 16, %s32
        %s324 = smul.u32 16, %s31
        %p325 = scmp.eq.s32.totalorder %s32, 0
        // Predicated region
        $region53: #{tpu_custom_call.1} parent=35 // pred_check
          %p326 = pneg %p325
        $region54: #{tpu_custom_call.1} parent=35 // pred_check_branch
          %328 = sbr.rel (%p326) target = $region56
        $region55: #{tpu_custom_call.1} parent=35 // pred_region
          %v329 = vld [vmem:[%s271] sm:$0xf]
          %v330 = vld [vmem:[%s271 + $0x4] sm:$0xf]
          %v331 = vld [vmem:[%s271 + $0x8] sm:$0xf]
          %v332 = vld [vmem:[%s271 + $0xc] sm:$0xf]
          %v333 = vld [vmem:[%s271 + $0x10] sm:$0xf]
          %v334 = vld [vmem:[%s271 + $0x14] sm:$0xf]
          %v335 = vld [vmem:[%s271 + $0x18] sm:$0xf]
          %v336 = vld [vmem:[%s271 + $0x1c] sm:$0xf]
          %v337 = vld [vmem:[%s271 + $0x20] sm:$0xf]
          %v338 = vld [vmem:[%s271 + $0x24] sm:$0xf]
          %v339 = vld [vmem:[%s271 + $0x28] sm:$0xf]
          %v340 = vld [vmem:[%s271 + $0x2c] sm:$0xf]
          %v341 = vld [vmem:[%s271 + $0x30] sm:$0xf]
          %v342 = vld [vmem:[%s271 + $0x34] sm:$0xf]
          %v343 = vld [vmem:[%s271 + $0x38] sm:$0xf]
          %v344 = vld [vmem:[%s271 + $0x3c] sm:$0xf]
          %v345 = vld [vmem:[#allocation11] sm:$0xf]
          %v346 = vld [vmem:[#allocation11 + $0x4] sm:$0xf]
          %v347 = vld [vmem:[#allocation11 + $0x8] sm:$0xf]
          %v348 = vld [vmem:[#allocation11 + $0xc] sm:$0xf]
          %v349 = vld [vmem:[#allocation11 + $0x10] sm:$0xf]
          %v350 = vld [vmem:[#allocation11 + $0x14] sm:$0xf]
          %v351 = vld [vmem:[#allocation11 + $0x18] sm:$0xf]
          %v352 = vld [vmem:[#allocation11 + $0x1c] sm:$0xf]
          %v353 = vld [vmem:[#allocation11 + $0x20] sm:$0xf]
          %v354 = vld [vmem:[#allocation11 + $0x24] sm:$0xf]
          %v355 = vld [vmem:[#allocation11 + $0x28] sm:$0xf]
          %v356 = vld [vmem:[#allocation11 + $0x2c] sm:$0xf]
          %v357 = vld [vmem:[#allocation11 + $0x30] sm:$0xf]
          %v358 = vld [vmem:[#allocation11 + $0x34] sm:$0xf]
          %v359 = vld [vmem:[#allocation11 + $0x38] sm:$0xf]
          %v360 = vld [vmem:[#allocation11 + $0x3c] sm:$0xf]
          %v377 = vunpack.c.l.b16 %v329
          %v378 = vunpack.c.l.b16 %v330
          %v379 = vunpack.c.l.b16 %v331
          %v380 = vunpack.c.l.b16 %v332
          %v381 = vunpack.c.l.b16 %v333
          %v382 = vunpack.c.l.b16 %v334
          %v383 = vunpack.c.l.b16 %v335
          %v384 = vunpack.c.l.b16 %v336
          %v385 = vunpack.c.l.b16 %v337
          %v386 = vunpack.c.l.b16 %v338
          %v387 = vunpack.c.l.b16 %v339
          %v388 = vunpack.c.l.b16 %v340
          %v389 = vunpack.c.l.b16 %v341
          %v390 = vunpack.c.l.b16 %v342
          %v391 = vunpack.c.l.b16 %v343
          %v392 = vunpack.c.l.b16 %v344
          %v393 = vpack.c.b16 %v378, %v377
          %v394 = vpack.c.b16 %v380, %v379
          %v395 = vpack.c.b16 %v382, %v381
          %v396 = vpack.c.b16 %v384, %v383
          %v397 = vpack.c.b16 %v386, %v385
          %v398 = vpack.c.b16 %v388, %v387
          %v399 = vpack.c.b16 %v390, %v389
          %v400 = vpack.c.b16 %v392, %v391
          %v425 = vunpack.c.l.b16 %v345
          %v426 = vunpack.c.l.b16 %v346
          %v427 = vunpack.c.l.b16 %v347
          %v428 = vunpack.c.l.b16 %v348
          %v429 = vunpack.c.l.b16 %v349
          %v430 = vunpack.c.l.b16 %v350
          %v431 = vunpack.c.l.b16 %v351
          %v432 = vunpack.c.l.b16 %v352
          %v433 = vunpack.c.l.b16 %v353
          %v434 = vunpack.c.l.b16 %v354
          %v435 = vunpack.c.l.b16 %v355
          %v436 = vunpack.c.l.b16 %v356
          %v437 = vunpack.c.l.b16 %v357
          %v438 = vunpack.c.l.b16 %v358
          %v439 = vunpack.c.l.b16 %v359
          %v440 = vunpack.c.l.b16 %v360
          %v441 = vpack.c.b16 %v426, %v425
          %v442 = vpack.c.b16 %v428, %v427
          %v443 = vpack.c.b16 %v430, %v429
          %v444 = vpack.c.b16 %v432, %v431
          %v445 = vpack.c.b16 %v434, %v433
          %v446 = vpack.c.b16 %v436, %v435
          %v447 = vpack.c.b16 %v438, %v437
          %v448 = vpack.c.b16 %v440, %v439
          %457 = vmatpush.bf16.msra.mxu0 %v448
          %458 = vmatpush.bf16.msra.mxu0 %v447
          %459 = vmatpush.bf16.msra.mxu0 %v446
          %460 = vmatpush.bf16.msra.mxu0 %v445
          %461 = vmatpush.bf16.msra.mxu0 %v444
          %462 = vmatpush.bf16.msra.mxu0 %v443
          %463 = vmatpush.bf16.msra.mxu0 %v442
          %464 = vmatpush.bf16.msra.mxu0 %v441
          %465 = vmatmul.bf16.gmra.mxu0 %v393
          %v466 = vpop.f32.mrf.mxu0
          %v467 = vadd.f32 0.0, %v466
          %v468 = vpop.f32.mrf.mxu0
          %v469 = vadd.f32 0.0, %v468
          %470 = vmatmul.bf16.gmra.mxu0 %v394
          %v471 = vpop.f32.mrf.mxu0
          %v472 = vadd.f32 0.0, %v471
          %v473 = vpop.f32.mrf.mxu0
          %v474 = vadd.f32 0.0, %v473
          %475 = vmatmul.bf16.gmra.mxu0 %v395
          %v476 = vpop.f32.mrf.mxu0
          %v477 = vadd.f32 0.0, %v476
          %v478 = vpop.f32.mrf.mxu0
          %v479 = vadd.f32 0.0, %v478
          %480 = vmatmul.bf16.gmra.mxu0 %v396
          %v481 = vpop.f32.mrf.mxu0
          %v482 = vadd.f32 0.0, %v481
          %v483 = vpop.f32.mrf.mxu0
          %v484 = vadd.f32 0.0, %v483
          %485 = vmatmul.bf16.gmra.mxu0 %v397
          %v486 = vpop.f32.mrf.mxu0
          %v487 = vadd.f32 0.0, %v486
          %v488 = vpop.f32.mrf.mxu0
          %v489 = vadd.f32 0.0, %v488
          %490 = vmatmul.bf16.gmra.mxu0 %v398
          %v491 = vpop.f32.mrf.mxu0
          %v492 = vadd.f32 0.0, %v491
          %v493 = vpop.f32.mrf.mxu0
          %v494 = vadd.f32 0.0, %v493
          %495 = vmatmul.bf16.gmra.mxu0 %v399
          %v496 = vpop.f32.mrf.mxu0
          %v497 = vadd.f32 0.0, %v496
          %v498 = vpop.f32.mrf.mxu0
          %v499 = vadd.f32 0.0, %v498
          %500 = vmatmul.bf16.gmra.mxu0 %v400
          %v501 = vpop.f32.mrf.mxu0
          %v502 = vadd.f32 0.0, %v501
          %v503 = vpop.f32.mrf.mxu0
          %v504 = vadd.f32 0.0, %v503
          %505 = vdwg.mxu0
          %v506 = vmul.f32 %v467, 0.57735026
          %v507 = vmul.f32 %v469, 0.57735026
          %v508 = vmul.f32 %v472, 0.57735026
          %v509 = vmul.f32 %v474, 0.57735026
          %v510 = vmul.f32 %v477, 0.57735026
          %v511 = vmul.f32 %v479, 0.57735026
          %v512 = vmul.f32 %v482, 0.57735026
          %v513 = vmul.f32 %v484, 0.57735026
          %v514 = vmul.f32 %v487, 0.57735026
          %v515 = vmul.f32 %v489, 0.57735026
          %v516 = vmul.f32 %v492, 0.57735026
          %v517 = vmul.f32 %v494, 0.57735026
          %v518 = vmul.f32 %v497, 0.57735026
          %v519 = vmul.f32 %v499, 0.57735026
          %v520 = vmul.f32 %v502, 0.57735026
          %v521 = vmul.f32 %v504, 0.57735026
          %v522 = vpack.c.bf16 %v506, %v506
          %v523 = vpack.c.bf16 %v507, %v507
          %v524 = vpack.c.bf16 %v508, %v508
          %v525 = vpack.c.bf16 %v509, %v509
          %v526 = vpack.c.bf16 %v510, %v510
          %v527 = vpack.c.bf16 %v511, %v511
          %v528 = vpack.c.bf16 %v512, %v512
          %v529 = vpack.c.bf16 %v513, %v513
          %v530 = vpack.c.bf16 %v514, %v514
          %v531 = vpack.c.bf16 %v515, %v515
          %v532 = vpack.c.bf16 %v516, %v516
          %v533 = vpack.c.bf16 %v517, %v517
          %v534 = vpack.c.bf16 %v518, %v518
          %v535 = vpack.c.bf16 %v519, %v519
          %v536 = vpack.c.bf16 %v520, %v520
          %v537 = vpack.c.bf16 %v521, %v521
          %538 = vst [vmem:[#allocation2] sm:$0xf] %v522
          %539 = vst [vmem:[#allocation2 + $0x4] sm:$0xf] %v523
          %540 = vst [vmem:[#allocation2 + $0x8] sm:$0xf] %v524
          %541 = vst [vmem:[#allocation2 + $0xc] sm:$0xf] %v525
          %542 = vst [vmem:[#allocation2 + $0x10] sm:$0xf] %v526
          %543 = vst [vmem:[#allocation2 + $0x14] sm:$0xf] %v527
          %544 = vst [vmem:[#allocation2 + $0x18] sm:$0xf] %v528
          %545 = vst [vmem:[#allocation2 + $0x1c] sm:$0xf] %v529
          %546 = vst [vmem:[#allocation2 + $0x20] sm:$0xf] %v530
          %547 = vst [vmem:[#allocation2 + $0x24] sm:$0xf] %v531
          %548 = vst [vmem:[#allocation2 + $0x28] sm:$0xf] %v532
          %549 = vst [vmem:[#allocation2 + $0x2c] sm:$0xf] %v533
          %550 = vst [vmem:[#allocation2 + $0x30] sm:$0xf] %v534
          %551 = vst [vmem:[#allocation2 + $0x34] sm:$0xf] %v535
          %552 = vst [vmem:[#allocation2 + $0x38] sm:$0xf] %v536
          %553 = vst [vmem:[#allocation2 + $0x3c] sm:$0xf] %v537
          %vm554 = vcmask 7168
          %555 = vst.msk [vmem:[#allocation3] sm:$0xff] %vm554, -1e+30
          %556 = vst.msk [vmem:[#allocation3 + $0x8] sm:$0xff] %vm554, -1e+30
          %557 = vst.msk [vmem:[#allocation3 + $0x10] sm:$0xff] %vm554, -1e+30
          %558 = vst.msk [vmem:[#allocation3 + $0x18] sm:$0xff] %vm554, -1e+30
          %559 = vst.msk [vmem:[#allocation3 + $0x20] sm:$0xff] %vm554, -1e+30
          %560 = vst.msk [vmem:[#allocation3 + $0x28] sm:$0xff] %vm554, -1e+30
          %561 = vst.msk [vmem:[#allocation3 + $0x30] sm:$0xff] %vm554, -1e+30
          %562 = vst.msk [vmem:[#allocation3 + $0x38] sm:$0xff] %vm554, -1e+30
          %563 = vst.msk [vmem:[#allocation3 + $0x40] sm:$0xff] %vm554, -1e+30
          %564 = vst.msk [vmem:[#allocation3 + $0x48] sm:$0xff] %vm554, -1e+30
          %565 = vst.msk [vmem:[#allocation3 + $0x50] sm:$0xff] %vm554, -1e+30
          %566 = vst.msk [vmem:[#allocation3 + $0x58] sm:$0xff] %vm554, -1e+30
          %567 = vst.msk [vmem:[#allocation3 + $0x60] sm:$0xff] %vm554, -1e+30
          %568 = vst.msk [vmem:[#allocation3 + $0x68] sm:$0xff] %vm554, -1e+30
          %569 = vst.msk [vmem:[#allocation3 + $0x70] sm:$0xff] %vm554, -1e+30
          %570 = vst.msk [vmem:[#allocation3 + $0x78] sm:$0xff] %vm554, -1e+30
          %571 = vst.msk [vmem:[#allocation4] sm:$0xff] %vm554, 0.0
          %572 = vst.msk [vmem:[#allocation4 + $0x8] sm:$0xff] %vm554, 0.0
          %573 = vst.msk [vmem:[#allocation4 + $0x10] sm:$0xff] %vm554, 0.0
          %574 = vst.msk [vmem:[#allocation4 + $0x18] sm:$0xff] %vm554, 0.0
          %575 = vst.msk [vmem:[#allocation4 + $0x20] sm:$0xff] %vm554, 0.0
          %576 = vst.msk [vmem:[#allocation4 + $0x28] sm:$0xff] %vm554, 0.0
          %577 = vst.msk [vmem:[#allocation4 + $0x30] sm:$0xff] %vm554, 0.0
          %578 = vst.msk [vmem:[#allocation4 + $0x38] sm:$0xff] %vm554, 0.0
          %579 = vst.msk [vmem:[#allocation4 + $0x40] sm:$0xff] %vm554, 0.0
          %580 = vst.msk [vmem:[#allocation4 + $0x48] sm:$0xff] %vm554, 0.0
          %581 = vst.msk [vmem:[#allocation4 + $0x50] sm:$0xff] %vm554, 0.0
          %582 = vst.msk [vmem:[#allocation4 + $0x58] sm:$0xff] %vm554, 0.0
          %583 = vst.msk [vmem:[#allocation4 + $0x60] sm:$0xff] %vm554, 0.0
          %584 = vst.msk [vmem:[#allocation4 + $0x68] sm:$0xff] %vm554, 0.0
          %585 = vst.msk [vmem:[#allocation4 + $0x70] sm:$0xff] %vm554, 0.0
          %586 = vst.msk [vmem:[#allocation4 + $0x78] sm:$0xff] %vm554, 0.0
          %587 = vst [vmem:[#allocation5] sm:$0xff] 0.0
          %588 = vst [vmem:[#allocation5 + $0x8] sm:$0xff] 0.0
          %589 = vst [vmem:[#allocation5 + $0x10] sm:$0xff] 0.0
          %590 = vst [vmem:[#allocation5 + $0x18] sm:$0xff] 0.0
          %591 = vst [vmem:[#allocation5 + $0x20] sm:$0xff] 0.0
          %592 = vst [vmem:[#allocation5 + $0x28] sm:$0xff] 0.0
          %593 = vst [vmem:[#allocation5 + $0x30] sm:$0xff] 0.0
          %594 = vst [vmem:[#allocation5 + $0x38] sm:$0xff] 0.0
          %595 = vst [vmem:[#allocation5 + $0x40] sm:$0xff] 0.0
          %596 = vst [vmem:[#allocation5 + $0x48] sm:$0xff] 0.0
          %597 = vst [vmem:[#allocation5 + $0x50] sm:$0xff] 0.0
          %598 = vst [vmem:[#allocation5 + $0x58] sm:$0xff] 0.0
          %599 = vst [vmem:[#allocation5 + $0x60] sm:$0xff] 0.0
          %600 = vst [vmem:[#allocation5 + $0x68] sm:$0xff] 0.0
          %601 = vst [vmem:[#allocation5 + $0x70] sm:$0xff] 0.0
          %602 = vst [vmem:[#allocation5 + $0x78] sm:$0xff] 0.0
        $region56: #{tpu_custom_call.1} parent=35 // pred_fallthru
          _
        %p603 = scmp.le.s32.totalorder %s32, %s31
        // Predicated region
        $region57: #{tpu_custom_call.1} parent=35 // pred_check
          %p604 = pneg %p603
        $region58: #{tpu_custom_call.1} parent=35 // pred_check_branch
          %606 = sbr.rel (%p604) target = $region60
        $region59: #{tpu_custom_call.1} parent=35 // pred_region
          %v607 = vld [vmem:[%s281] sm:$0xf]
          %v608 = vld [vmem:[%s281 + $0x4] sm:$0xf]
          %v609 = vld [vmem:[%s281 + $0x8] sm:$0xf]
          %v610 = vld [vmem:[%s281 + $0xc] sm:$0xf]
          %v611 = vld [vmem:[%s281 + $0x10] sm:$0xf]
          %v612 = vld [vmem:[%s281 + $0x14] sm:$0xf]
          %v613 = vld [vmem:[%s281 + $0x18] sm:$0xf]
          %v614 = vld [vmem:[%s281 + $0x1c] sm:$0xf]
          %v615 = vld [vmem:[%s281 + $0x20] sm:$0xf]
          %v616 = vld [vmem:[%s281 + $0x24] sm:$0xf]
          %v617 = vld [vmem:[%s281 + $0x28] sm:$0xf]
          %v618 = vld [vmem:[%s281 + $0x2c] sm:$0xf]
          %v619 = vld [vmem:[%s281 + $0x30] sm:$0xf]
          %v620 = vld [vmem:[%s281 + $0x34] sm:$0xf]
          %v621 = vld [vmem:[%s281 + $0x38] sm:$0xf]
          %v622 = vld [vmem:[%s281 + $0x3c] sm:$0xf]
          %v623 = vld [vmem:[#allocation12] sm:$0xff]
          %v624 = vld [vmem:[#allocation12 + $0x8] sm:$0xff]
          %v625 = vld [vmem:[#allocation12 + $0x10] sm:$0xff]
          %v626 = vld [vmem:[#allocation12 + $0x18] sm:$0xff]
          %v627 = vld [vmem:[#allocation12 + $0x20] sm:$0xff]
          %v628 = vld [vmem:[#allocation12 + $0x28] sm:$0xff]
          %v629 = vld [vmem:[#allocation12 + $0x30] sm:$0xff]
          %v630 = vld [vmem:[#allocation12 + $0x38] sm:$0xff]
          %v631 = vld [vmem:[#allocation12 + $0x40] sm:$0xff]
          %v632 = vld [vmem:[#allocation12 + $0x48] sm:$0xff]
          %v633 = vld [vmem:[#allocation12 + $0x50] sm:$0xff]
          %v634 = vld [vmem:[#allocation12 + $0x58] sm:$0xff]
          %v635 = vld [vmem:[#allocation12 + $0x60] sm:$0xff]
          %v636 = vld [vmem:[#allocation12 + $0x68] sm:$0xff]
          %v637 = vld [vmem:[#allocation12 + $0x70] sm:$0xff]
          %v638 = vld [vmem:[#allocation12 + $0x78] sm:$0xff]
          %v655 = vunpack.c.l.b16 %v607
          %v656 = vunpack.c.l.b16 %v608
          %v657 = vunpack.c.l.b16 %v609
          %v658 = vunpack.c.l.b16 %v610
          %v659 = vunpack.c.l.b16 %v611
          %v660 = vunpack.c.l.b16 %v612
          %v661 = vunpack.c.l.b16 %v613
          %v662 = vunpack.c.l.b16 %v614
          %v663 = vunpack.c.l.b16 %v615
          %v664 = vunpack.c.l.b16 %v616
          %v665 = vunpack.c.l.b16 %v617
          %v666 = vunpack.c.l.b16 %v618
          %v667 = vunpack.c.l.b16 %v619
          %v668 = vunpack.c.l.b16 %v620
          %v669 = vunpack.c.l.b16 %v621
          %v670 = vunpack.c.l.b16 %v622
          %v671 = vpack.c.b16 %v656, %v655
          %v672 = vpack.c.b16 %v658, %v657
          %v673 = vpack.c.b16 %v660, %v659
          %v674 = vpack.c.b16 %v662, %v661
          %v675 = vpack.c.b16 %v664, %v663
          %v676 = vpack.c.b16 %v666, %v665
          %v677 = vpack.c.b16 %v668, %v667
          %v678 = vpack.c.b16 %v670, %v669
          %v703 = vunpack.c.l.b16 %v623
          %v704 = vunpack.c.h.b16 %v623
          %v705 = vunpack.c.l.b16 %v624
          %v706 = vunpack.c.h.b16 %v624
          %v707 = vunpack.c.l.b16 %v625
          %v708 = vunpack.c.h.b16 %v625
          %v709 = vunpack.c.l.b16 %v626
          %v710 = vunpack.c.h.b16 %v626
          %v711 = vunpack.c.l.b16 %v627
          %v712 = vunpack.c.h.b16 %v627
          %v713 = vunpack.c.l.b16 %v628
          %v714 = vunpack.c.h.b16 %v628
          %v715 = vunpack.c.l.b16 %v629
          %v716 = vunpack.c.h.b16 %v629
          %v717 = vunpack.c.l.b16 %v630
          %v718 = vunpack.c.h.b16 %v630
          %v719 = vunpack.c.l.b16 %v631
          %v720 = vunpack.c.h.b16 %v631
          %v721 = vunpack.c.l.b16 %v632
          %v722 = vunpack.c.h.b16 %v632
          %v723 = vunpack.c.l.b16 %v633
          %v724 = vunpack.c.h.b16 %v633
          %v725 = vunpack.c.l.b16 %v634
          %v726 = vunpack.c.h.b16 %v634
          %v727 = vunpack.c.l.b16 %v635
          %v728 = vunpack.c.h.b16 %v635
          %v729 = vunpack.c.l.b16 %v636
          %v730 = vunpack.c.h.b16 %v636
          %v731 = vunpack.c.l.b16 %v637
          %v732 = vunpack.c.h.b16 %v637
          %v733 = vunpack.c.l.b16 %v638
          %v734 = vunpack.c.h.b16 %v638
          %v735 = vpack.c.b16 %v705, %v703
          %v736 = vpack.c.b16 %v706, %v704
          %v737 = vpack.c.b16 %v709, %v707
          %v738 = vpack.c.b16 %v710, %v708
          %v739 = vpack.c.b16 %v713, %v711
          %v740 = vpack.c.b16 %v714, %v712
          %v741 = vpack.c.b16 %v717, %v715
          %v742 = vpack.c.b16 %v718, %v716
          %v743 = vpack.c.b16 %v721, %v719
          %v744 = vpack.c.b16 %v722, %v720
          %v745 = vpack.c.b16 %v725, %v723
          %v746 = vpack.c.b16 %v726, %v724
          %v747 = vpack.c.b16 %v729, %v727
          %v748 = vpack.c.b16 %v730, %v728
          %v749 = vpack.c.b16 %v733, %v731
          %v750 = vpack.c.b16 %v734, %v732
          %767 = vmatpush.bf16.msra.mxu0 %v749
          %768 = vmatpush.bf16.msra.mxu0 %v747
          %769 = vmatpush.bf16.msra.mxu0 %v745
          %770 = vmatpush.bf16.msra.mxu0 %v743
          %771 = vmatpush.bf16.msra.mxu0 %v741
          %772 = vmatpush.bf16.msra.mxu0 %v739
          %773 = vmatpush.bf16.msra.mxu0 %v737
          %774 = vmatpush.bf16.msra.mxu0 %v735
          %775 = vmatmul.bf16.gmra.mxu0 %v671
          %v776 = vpop.f32.mrf.mxu0
          %v777 = vadd.f32 0.0, %v776
          %v778 = vpop.f32.mrf.mxu0
          %v779 = vadd.f32 0.0, %v778
          %780 = vmatmul.bf16.gmra.mxu0 %v672
          %v781 = vpop.f32.mrf.mxu0
          %v782 = vadd.f32 0.0, %v781
          %v783 = vpop.f32.mrf.mxu0
          %v784 = vadd.f32 0.0, %v783
          %785 = vmatmul.bf16.gmra.mxu0 %v673
          %v786 = vpop.f32.mrf.mxu0
          %v787 = vadd.f32 0.0, %v786
          %v788 = vpop.f32.mrf.mxu0
          %v789 = vadd.f32 0.0, %v788
          %790 = vmatmul.bf16.gmra.mxu0 %v674
          %v791 = vpop.f32.mrf.mxu0
          %v792 = vadd.f32 0.0, %v791
          %v793 = vpop.f32.mrf.mxu0
          %v794 = vadd.f32 0.0, %v793
          %795 = vmatmul.bf16.gmra.mxu0 %v675
          %v796 = vpop.f32.mrf.mxu0
          %v797 = vadd.f32 0.0, %v796
          %v798 = vpop.f32.mrf.mxu0
          %v799 = vadd.f32 0.0, %v798
          %800 = vmatmul.bf16.gmra.mxu0 %v676
          %v801 = vpop.f32.mrf.mxu0
          %v802 = vadd.f32 0.0, %v801
          %v803 = vpop.f32.mrf.mxu0
          %v804 = vadd.f32 0.0, %v803
          %805 = vmatmul.bf16.gmra.mxu0 %v677
          %v806 = vpop.f32.mrf.mxu0
          %v807 = vadd.f32 0.0, %v806
          %v808 = vpop.f32.mrf.mxu0
          %v809 = vadd.f32 0.0, %v808
          %810 = vmatmul.bf16.gmra.mxu0 %v678
          %v811 = vpop.f32.mrf.mxu0
          %v812 = vadd.f32 0.0, %v811
          %v813 = vpop.f32.mrf.mxu0
          %v814 = vadd.f32 0.0, %v813
          %815 = vdwg.mxu0
          %816 = vmatpush.bf16.msra.mxu0 %v750
          %817 = vmatpush.bf16.msra.mxu0 %v748
          %818 = vmatpush.bf16.msra.mxu0 %v746
          %819 = vmatpush.bf16.msra.mxu0 %v744
          %820 = vmatpush.bf16.msra.mxu0 %v742
          %821 = vmatpush.bf16.msra.mxu0 %v740
          %822 = vmatpush.bf16.msra.mxu0 %v738
          %823 = vmatpush.bf16.msra.mxu0 %v736
          %824 = vmatmul.bf16.gmra.mxu0 %v671
          %v825 = vpop.f32.mrf.mxu0
          %v826 = vadd.f32 0.0, %v825
          %v827 = vpop.f32.mrf.mxu0
          %v828 = vadd.f32 0.0, %v827
          %829 = vmatmul.bf16.gmra.mxu0 %v672
          %v830 = vpop.f32.mrf.mxu0
          %v831 = vadd.f32 0.0, %v830
          %v832 = vpop.f32.mrf.mxu0
          %v833 = vadd.f32 0.0, %v832
          %834 = vmatmul.bf16.gmra.mxu0 %v673
          %v835 = vpop.f32.mrf.mxu0
          %v836 = vadd.f32 0.0, %v835
          %v837 = vpop.f32.mrf.mxu0
          %v838 = vadd.f32 0.0, %v837
          %839 = vmatmul.bf16.gmra.mxu0 %v674
          %v840 = vpop.f32.mrf.mxu0
          %v841 = vadd.f32 0.0, %v840
          %v842 = vpop.f32.mrf.mxu0
          %v843 = vadd.f32 0.0, %v842
          %844 = vmatmul.bf16.gmra.mxu0 %v675
          %v845 = vpop.f32.mrf.mxu0
          %v846 = vadd.f32 0.0, %v845
          %v847 = vpop.f32.mrf.mxu0
          %v848 = vadd.f32 0.0, %v847
          %849 = vmatmul.bf16.gmra.mxu0 %v676
          %v850 = vpop.f32.mrf.mxu0
          %v851 = vadd.f32 0.0, %v850
          %v852 = vpop.f32.mrf.mxu0
          %v853 = vadd.f32 0.0, %v852
          %854 = vmatmul.bf16.gmra.mxu0 %v677
          %v855 = vpop.f32.mrf.mxu0
          %v856 = vadd.f32 0.0, %v855
          %v857 = vpop.f32.mrf.mxu0
          %v858 = vadd.f32 0.0, %v857
          %859 = vmatmul.bf16.gmra.mxu0 %v678
          %v860 = vpop.f32.mrf.mxu0
          %v861 = vadd.f32 0.0, %v860
          %v862 = vpop.f32.mrf.mxu0
          %v863 = vadd.f32 0.0, %v862
          %864 = vdwg.mxu0
          %v865 = vpack.c.bf16 %v779, %v777
          %v866 = vpack.c.bf16 %v784, %v782
          %v867 = vpack.c.bf16 %v789, %v787
          %v868 = vpack.c.bf16 %v794, %v792
          %v869 = vpack.c.bf16 %v799, %v797
          %v870 = vpack.c.bf16 %v804, %v802
          %v871 = vpack.c.bf16 %v809, %v807
          %v872 = vpack.c.bf16 %v814, %v812
          %v873 = vpack.c.bf16 %v828, %v826
          %v874 = vpack.c.bf16 %v833, %v831
          %v875 = vpack.c.bf16 %v838, %v836
          %v876 = vpack.c.bf16 %v843, %v841
          %v877 = vpack.c.bf16 %v848, %v846
          %v878 = vpack.c.bf16 %v853, %v851
          %v879 = vpack.c.bf16 %v858, %v856
          %v880 = vpack.c.bf16 %v863, %v861
          %v881 = vld [vmem:[#allocation2] sm:$0xf]
          %v882 = vld [vmem:[#allocation2 + $0x4] sm:$0xf]
          %v883 = vld [vmem:[#allocation2 + $0x8] sm:$0xf]
          %v884 = vld [vmem:[#allocation2 + $0xc] sm:$0xf]
          %v885 = vld [vmem:[#allocation2 + $0x10] sm:$0xf]
          %v886 = vld [vmem:[#allocation2 + $0x14] sm:$0xf]
          %v887 = vld [vmem:[#allocation2 + $0x18] sm:$0xf]
          %v888 = vld [vmem:[#allocation2 + $0x1c] sm:$0xf]
          %v889 = vld [vmem:[#allocation2 + $0x20] sm:$0xf]
          %v890 = vld [vmem:[#allocation2 + $0x24] sm:$0xf]
          %v891 = vld [vmem:[#allocation2 + $0x28] sm:$0xf]
          %v892 = vld [vmem:[#allocation2 + $0x2c] sm:$0xf]
          %v893 = vld [vmem:[#allocation2 + $0x30] sm:$0xf]
          %v894 = vld [vmem:[#allocation2 + $0x34] sm:$0xf]
          %v895 = vld [vmem:[#allocation2 + $0x38] sm:$0xf]
          %v896 = vld [vmem:[#allocation2 + $0x3c] sm:$0xf]
          %v913 = vunpack.c.l.b16 %v881
          %v914 = vunpack.c.l.b16 %v882
          %v915 = vunpack.c.l.b16 %v883
          %v916 = vunpack.c.l.b16 %v884
          %v917 = vunpack.c.l.b16 %v885
          %v918 = vunpack.c.l.b16 %v886
          %v919 = vunpack.c.l.b16 %v887
          %v920 = vunpack.c.l.b16 %v888
          %v921 = vunpack.c.l.b16 %v889
          %v922 = vunpack.c.l.b16 %v890
          %v923 = vunpack.c.l.b16 %v891
          %v924 = vunpack.c.l.b16 %v892
          %v925 = vunpack.c.l.b16 %v893
          %v926 = vunpack.c.l.b16 %v894
          %v927 = vunpack.c.l.b16 %v895
          %v928 = vunpack.c.l.b16 %v896
          %v929 = vpack.c.b16 %v914, %v913
          %v930 = vpack.c.b16 %v916, %v915
          %v931 = vpack.c.b16 %v918, %v917
          %v932 = vpack.c.b16 %v920, %v919
          %v933 = vpack.c.b16 %v922, %v921
          %v934 = vpack.c.b16 %v924, %v923
          %v935 = vpack.c.b16 %v926, %v925
          %v936 = vpack.c.b16 %v928, %v927
          %945 = vmatpush.bf16.xpose.msra.mxu0 %v872
          %946 = vmatpush.bf16.xpose.msra.mxu0 %v871
          %947 = vmatpush.bf16.xpose.msra.mxu0 %v870
          %948 = vmatpush.bf16.xpose.msra.mxu0 %v869
          %949 = vmatpush.bf16.xpose.msra.mxu0 %v868
          %950 = vmatpush.bf16.xpose.msra.mxu0 %v867
          %951 = vmatpush.bf16.xpose.msra.mxu0 %v866
          %952 = vmatpush.bf16.xpose.msra.mxu0 %v865
          %953 = vmatmul.bf16.gmra.mxu0 %v929
          %v954 = vpop.f32.mrf.mxu0
          %v955 = vadd.f32 0.0, %v954
          %v956 = vpop.f32.mrf.mxu0
          %v957 = vadd.f32 0.0, %v956
          %958 = vmatmul.bf16.gmra.mxu0 %v930
          %v959 = vpop.f32.mrf.mxu0
          %v960 = vadd.f32 0.0, %v959
          %v961 = vpop.f32.mrf.mxu0
          %v962 = vadd.f32 0.0, %v961
          %963 = vmatmul.bf16.gmra.mxu0 %v931
          %v964 = vpop.f32.mrf.mxu0
          %v965 = vadd.f32 0.0, %v964
          %v966 = vpop.f32.mrf.mxu0
          %v967 = vadd.f32 0.0, %v966
          %968 = vmatmul.bf16.gmra.mxu0 %v932
          %v969 = vpop.f32.mrf.mxu0
          %v970 = vadd.f32 0.0, %v969
          %v971 = vpop.f32.mrf.mxu0
          %v972 = vadd.f32 0.0, %v971
          %973 = vmatmul.bf16.gmra.mxu0 %v933
          %v974 = vpop.f32.mrf.mxu0
          %v975 = vadd.f32 0.0, %v974
          %v976 = vpop.f32.mrf.mxu0
          %v977 = vadd.f32 0.0, %v976
          %978 = vmatmul.bf16.gmra.mxu0 %v934
          %v979 = vpop.f32.mrf.mxu0
          %v980 = vadd.f32 0.0, %v979
          %v981 = vpop.f32.mrf.mxu0
          %v982 = vadd.f32 0.0, %v981
          %983 = vmatmul.bf16.gmra.mxu0 %v935
          %v984 = vpop.f32.mrf.mxu0
          %v985 = vadd.f32 0.0, %v984
          %v986 = vpop.f32.mrf.mxu0
          %v987 = vadd.f32 0.0, %v986
          %988 = vmatmul.bf16.gmra.mxu0 %v936
          %v989 = vpop.f32.mrf.mxu0
          %v990 = vadd.f32 0.0, %v989
          %v991 = vpop.f32.mrf.mxu0
          %v992 = vadd.f32 0.0, %v991
          %993 = vdwg.mxu0
          %v994 = vlaneseq
          %v995 = vshrl.u32 %v994, 7
          %v996 = vadd.s32 %v995, 8
          %v997 = vadd.s32 %v995, 16
          %v998 = vadd.s32 %v995, 24
          %v999 = vadd.s32 %v995, 32
          %v1000 = vadd.s32 %v995, 40
          %v1001 = vadd.s32 %v995, 48
          %v1002 = vadd.s32 %v995, 56
          %v1003 = vadd.s32 %v995, 64
          %v1004 = vadd.s32 %v995, 72
          %v1005 = vadd.s32 %v995, 80
          %v1006 = vadd.s32 %v995, 88
          %v1007 = vadd.s32 %v995, 96
          %v1008 = vadd.s32 %v995, 104
          %v1009 = vadd.s32 %v995, 112
          %v1010 = vadd.s32 %v995, 120
          %v1011 = vlaneseq
          %v1012 = vand.u32 %v1011, 127
          %p1013 = scmp.eq.s32.totalorder %s32, %s31
          %vm1014 = vcmp.gt.s32.totalorder %v1012, %v995
          %vm1015 = vcmp.gt.s32.totalorder %v1012, %v996
          %vm1016 = vcmp.gt.s32.totalorder %v1012, %v997
          %vm1017 = vcmp.gt.s32.totalorder %v1012, %v998
          %vm1018 = vcmp.gt.s32.totalorder %v1012, %v999
          %vm1019 = vcmp.gt.s32.totalorder %v1012, %v1000
          %vm1020 = vcmp.gt.s32.totalorder %v1012, %v1001
          %vm1021 = vcmp.gt.s32.totalorder %v1012, %v1002
          %vm1022 = vcmp.gt.s32.totalorder %v1012, %v1003
          %vm1023 = vcmp.gt.s32.totalorder %v1012, %v1004
          %vm1024 = vcmp.gt.s32.totalorder %v1012, %v1005
          %vm1025 = vcmp.gt.s32.totalorder %v1012, %v1006
          %vm1026 = vcmp.gt.s32.totalorder %v1012, %v1007
          %vm1027 = vcmp.gt.s32.totalorder %v1012, %v1008
          %vm1028 = vcmp.gt.s32.totalorder %v1012, %v1009
          %vm1029 = vcmp.gt.s32.totalorder %v1012, %v1010
          %s1030 = scalar_select %p1013, 1, 0
          %v1031 = vstv %s1030
          %vm1032 = vcmp.eq.s32.totalorder %v1031, 1
          %vm1033 = vmand %vm1032, %vm1014
          %vm1034 = vmand %vm1032, %vm1015
          %vm1035 = vmand %vm1032, %vm1016
          %vm1036 = vmand %vm1032, %vm1017
          %vm1037 = vmand %vm1032, %vm1018
          %vm1038 = vmand %vm1032, %vm1019
          %vm1039 = vmand %vm1032, %vm1020
          %vm1040 = vmand %vm1032, %vm1021
          %vm1041 = vmand %vm1032, %vm1022
          %vm1042 = vmand %vm1032, %vm1023
          %vm1043 = vmand %vm1032, %vm1024
          %vm1044 = vmand %vm1032, %vm1025
          %vm1045 = vmand %vm1032, %vm1026
          %vm1046 = vmand %vm1032, %vm1027
          %vm1047 = vmand %vm1032, %vm1028
          %vm1048 = vmand %vm1032, %vm1029
          %v1049 = vsel %vm1033, -1e+30, %v955
          %v1050 = vsel %vm1034, -1e+30, %v957
          %v1051 = vsel %vm1035, -1e+30, %v960
          %v1052 = vsel %vm1036, -1e+30, %v962
          %v1053 = vsel %vm1037, -1e+30, %v965
          %v1054 = vsel %vm1038, -1e+30, %v967
          %v1055 = vsel %vm1039, -1e+30, %v970
          %v1056 = vsel %vm1040, -1e+30, %v972
          %v1057 = vsel %vm1041, -1e+30, %v975
          %v1058 = vsel %vm1042, -1e+30, %v977
          %v1059 = vsel %vm1043, -1e+30, %v980
          %v1060 = vsel %vm1044, -1e+30, %v982
          %v1061 = vsel %vm1045, -1e+30, %v985
          %v1062 = vsel %vm1046, -1e+30, %v987
          %v1063 = vsel %vm1047, -1e+30, %v990
          %v1064 = vsel %vm1048, -1e+30, %v992
          %v1065 = vld [vmem:[#allocation3] sm:$0xff]
          %v1066 = vld [vmem:[#allocation3 + $0x8] sm:$0xff]
          %v1067 = vld [vmem:[#allocation3 + $0x10] sm:$0xff]
          %v1068 = vld [vmem:[#allocation3 + $0x18] sm:$0xff]
          %v1069 = vld [vmem:[#allocation3 + $0x20] sm:$0xff]
          %v1070 = vld [vmem:[#allocation3 + $0x28] sm:$0xff]
          %v1071 = vld [vmem:[#allocation3 + $0x30] sm:$0xff]
          %v1072 = vld [vmem:[#allocation3 + $0x38] sm:$0xff]
          %v1073 = vld [vmem:[#allocation3 + $0x40] sm:$0xff]
          %v1074 = vld [vmem:[#allocation3 + $0x48] sm:$0xff]
          %v1075 = vld [vmem:[#allocation3 + $0x50] sm:$0xff]
          %v1076 = vld [vmem:[#allocation3 + $0x58] sm:$0xff]
          %v1077 = vld [vmem:[#allocation3 + $0x60] sm:$0xff]
          %v1078 = vld [vmem:[#allocation3 + $0x68] sm:$0xff]
          %v1079 = vld [vmem:[#allocation3 + $0x70] sm:$0xff]
          %v1080 = vld [vmem:[#allocation3 + $0x78] sm:$0xff]
          %1081 = vmax.xlane.f32.xlu0 %v1049
          %v1082 = vpop.xlane.xlu0 %1081
          %1083 = vmax.xlane.f32.xlu0 %v1050
          %v1084 = vpop.xlane.xlu0 %1083
          %1085 = vmax.xlane.f32.xlu0 %v1051
          %v1086 = vpop.xlane.xlu0 %1085
          %1087 = vmax.xlane.f32.xlu0 %v1052
          %v1088 = vpop.xlane.xlu0 %1087
          %1089 = vmax.xlane.f32.xlu0 %v1053
          %v1090 = vpop.xlane.xlu0 %1089
          %1091 = vmax.xlane.f32.xlu0 %v1054
          %v1092 = vpop.xlane.xlu0 %1091
          %1093 = vmax.xlane.f32.xlu0 %v1055
          %v1094 = vpop.xlane.xlu0 %1093
          %1095 = vmax.xlane.f32.xlu0 %v1056
          %v1096 = vpop.xlane.xlu0 %1095
          %1097 = vmax.xlane.f32.xlu0 %v1057
          %v1098 = vpop.xlane.xlu0 %1097
          %1099 = vmax.xlane.f32.xlu0 %v1058
          %v1100 = vpop.xlane.xlu0 %1099
          %1101 = vmax.xlane.f32.xlu0 %v1059
          %v1102 = vpop.xlane.xlu0 %1101
          %1103 = vmax.xlane.f32.xlu0 %v1060
          %v1104 = vpop.xlane.xlu0 %1103
          %1105 = vmax.xlane.f32.xlu0 %v1061
          %v1106 = vpop.xlane.xlu0 %1105
          %1107 = vmax.xlane.f32.xlu0 %v1062
          %v1108 = vpop.xlane.xlu0 %1107
          %1109 = vmax.xlane.f32.xlu0 %v1063
          %v1110 = vpop.xlane.xlu0 %1109
          %1111 = vmax.xlane.f32.xlu0 %v1064
          %v1112 = vpop.xlane.xlu0 %1111
          %v1113 = vmax.f32 %v1065, %v1082
          %v1114 = vmax.f32 %v1066, %v1084
          %v1115 = vmax.f32 %v1067, %v1086
          %v1116 = vmax.f32 %v1068, %v1088
          %v1117 = vmax.f32 %v1069, %v1090
          %v1118 = vmax.f32 %v1070, %v1092
          %v1119 = vmax.f32 %v1071, %v1094
          %v1120 = vmax.f32 %v1072, %v1096
          %v1121 = vmax.f32 %v1073, %v1098
          %v1122 = vmax.f32 %v1074, %v1100
          %v1123 = vmax.f32 %v1075, %v1102
          %v1124 = vmax.f32 %v1076, %v1104
          %v1125 = vmax.f32 %v1077, %v1106
          %v1126 = vmax.f32 %v1078, %v1108
          %v1127 = vmax.f32 %v1079, %v1110
          %v1128 = vmax.f32 %v1080, %v1112
          %v1129 = vsub.f32 %v1065, %v1113
          %v1130 = vsub.f32 %v1066, %v1114
          %v1131 = vsub.f32 %v1067, %v1115
          %v1132 = vsub.f32 %v1068, %v1116
          %v1133 = vsub.f32 %v1069, %v1117
          %v1134 = vsub.f32 %v1070, %v1118
          %v1135 = vsub.f32 %v1071, %v1119
          %v1136 = vsub.f32 %v1072, %v1120
          %v1137 = vsub.f32 %v1073, %v1121
          %v1138 = vsub.f32 %v1074, %v1122
          %v1139 = vsub.f32 %v1075, %v1123
          %v1140 = vsub.f32 %v1076, %v1124
          %v1141 = vsub.f32 %v1077, %v1125
          %v1142 = vsub.f32 %v1078, %v1126
          %v1143 = vsub.f32 %v1079, %v1127
          %v1144 = vsub.f32 %v1080, %v1128
          %v1145 = vmul.f32 %v1129, 1.442695
          %v1146 = vpow.pop %v1145
          %v1147 = vmul.f32 %v1130, 1.442695
          %v1148 = vpow.pop %v1147
          %v1149 = vmul.f32 %v1131, 1.442695
          %v1150 = vpow.pop %v1149
          %v1151 = vmul.f32 %v1132, 1.442695
          %v1152 = vpow.pop %v1151
          %v1153 = vmul.f32 %v1133, 1.442695
          %v1154 = vpow.pop %v1153
          %v1155 = vmul.f32 %v1134, 1.442695
          %v1156 = vpow.pop %v1155
          %v1157 = vmul.f32 %v1135, 1.442695
          %v1158 = vpow.pop %v1157
          %v1159 = vmul.f32 %v1136, 1.442695
          %v1160 = vpow.pop %v1159
          %v1161 = vmul.f32 %v1137, 1.442695
          %v1162 = vpow.pop %v1161
          %v1163 = vmul.f32 %v1138, 1.442695
          %v1164 = vpow.pop %v1163
          %v1165 = vmul.f32 %v1139, 1.442695
          %v1166 = vpow.pop %v1165
          %v1167 = vmul.f32 %v1140, 1.442695
          %v1168 = vpow.pop %v1167
          %v1169 = vmul.f32 %v1141, 1.442695
          %v1170 = vpow.pop %v1169
          %v1171 = vmul.f32 %v1142, 1.442695
          %v1172 = vpow.pop %v1171
          %v1173 = vmul.f32 %v1143, 1.442695
          %v1174 = vpow.pop %v1173
          %v1175 = vmul.f32 %v1144, 1.442695
          %v1176 = vpow.pop %v1175
          %1178 = vset.pattern.permute.xlu0 0
          %1179 = vperm.xlu0 %1178, %v1113
          %v1180 = vpop.permute.xlu0 %1179
          %1183 = vset.pattern.permute.xlu0 0
          %1184 = vperm.xlu0 %1183, %v1114
          %v1185 = vpop.permute.xlu0 %1184
          %1188 = vset.pattern.permute.xlu0 0
          %1189 = vperm.xlu0 %1188, %v1115
          %v1190 = vpop.permute.xlu0 %1189
          %1193 = vset.pattern.permute.xlu0 0
          %1194 = vperm.xlu0 %1193, %v1116
          %v1195 = vpop.permute.xlu0 %1194
          %1198 = vset.pattern.permute.xlu0 0
          %1199 = vperm.xlu0 %1198, %v1117
          %v1200 = vpop.permute.xlu0 %1199
          %1203 = vset.pattern.permute.xlu0 0
          %1204 = vperm.xlu0 %1203, %v1118
          %v1205 = vpop.permute.xlu0 %1204
          %1208 = vset.pattern.permute.xlu0 0
          %1209 = vperm.xlu0 %1208, %v1119
          %v1210 = vpop.permute.xlu0 %1209
          %1213 = vset.pattern.permute.xlu0 0
          %1214 = vperm.xlu0 %1213, %v1120
          %v1215 = vpop.permute.xlu0 %1214
          %1218 = vset.pattern.permute.xlu0 0
          %1219 = vperm.xlu0 %1218, %v1121
          %v1220 = vpop.permute.xlu0 %1219
          %1223 = vset.pattern.permute.xlu0 0
          %1224 = vperm.xlu0 %1223, %v1122
          %v1225 = vpop.permute.xlu0 %1224
          %1228 = vset.pattern.permute.xlu0 0
          %1229 = vperm.xlu0 %1228, %v1123
          %v1230 = vpop.permute.xlu0 %1229
          %1233 = vset.pattern.permute.xlu0 0
          %1234 = vperm.xlu0 %1233, %v1124
          %v1235 = vpop.permute.xlu0 %1234
          %1238 = vset.pattern.permute.xlu0 0
          %1239 = vperm.xlu0 %1238, %v1125
          %v1240 = vpop.permute.xlu0 %1239
          %1243 = vset.pattern.permute.xlu0 0
          %1244 = vperm.xlu0 %1243, %v1126
          %v1245 = vpop.permute.xlu0 %1244
          %1248 = vset.pattern.permute.xlu0 0
          %1249 = vperm.xlu0 %1248, %v1127
          %v1250 = vpop.permute.xlu0 %1249
          %1253 = vset.pattern.permute.xlu0 0
          %1254 = vperm.xlu0 %1253, %v1128
          %v1255 = vpop.permute.xlu0 %1254
          %v1257 = vsub.f32 %v1049, %v1180
          %v1258 = vsub.f32 %v1050, %v1185
          %v1259 = vsub.f32 %v1051, %v1190
          %v1260 = vsub.f32 %v1052, %v1195
          %v1261 = vsub.f32 %v1053, %v1200
          %v1262 = vsub.f32 %v1054, %v1205
          %v1263 = vsub.f32 %v1055, %v1210
          %v1264 = vsub.f32 %v1056, %v1215
          %v1265 = vsub.f32 %v1057, %v1220
          %v1266 = vsub.f32 %v1058, %v1225
          %v1267 = vsub.f32 %v1059, %v1230
          %v1268 = vsub.f32 %v1060, %v1235
          %v1269 = vsub.f32 %v1061, %v1240
          %v1270 = vsub.f32 %v1062, %v1245
          %v1271 = vsub.f32 %v1063, %v1250
          %v1272 = vsub.f32 %v1064, %v1255
          %v1273 = vmul.f32 %v1257, 1.442695
          %v1274 = vpow.pop %v1273
          %v1275 = vmul.f32 %v1258, 1.442695
          %v1276 = vpow.pop %v1275
          %v1277 = vmul.f32 %v1259, 1.442695
          %v1278 = vpow.pop %v1277
          %v1279 = vmul.f32 %v1260, 1.442695
          %v1280 = vpow.pop %v1279
          %v1281 = vmul.f32 %v1261, 1.442695
          %v1282 = vpow.pop %v1281
          %v1283 = vmul.f32 %v1262, 1.442695
          %v1284 = vpow.pop %v1283
          %v1285 = vmul.f32 %v1263, 1.442695
          %v1286 = vpow.pop %v1285
          %v1287 = vmul.f32 %v1264, 1.442695
          %v1288 = vpow.pop %v1287
          %v1289 = vmul.f32 %v1265, 1.442695
          %v1290 = vpow.pop %v1289
          %v1291 = vmul.f32 %v1266, 1.442695
          %v1292 = vpow.pop %v1291
          %v1293 = vmul.f32 %v1267, 1.442695
          %v1294 = vpow.pop %v1293
          %v1295 = vmul.f32 %v1268, 1.442695
          %v1296 = vpow.pop %v1295
          %v1297 = vmul.f32 %v1269, 1.442695
          %v1298 = vpow.pop %v1297
          %v1299 = vmul.f32 %v1270, 1.442695
          %v1300 = vpow.pop %v1299
          %v1301 = vmul.f32 %v1271, 1.442695
          %v1302 = vpow.pop %v1301
          %v1303 = vmul.f32 %v1272, 1.442695
          %v1304 = vpow.pop %v1303
          %v1305 = vld [vmem:[#allocation4] sm:$0xff]
          %v1306 = vld [vmem:[#allocation4 + $0x8] sm:$0xff]
          %v1307 = vld [vmem:[#allocation4 + $0x10] sm:$0xff]
          %v1308 = vld [vmem:[#allocation4 + $0x18] sm:$0xff]
          %v1309 = vld [vmem:[#allocation4 + $0x20] sm:$0xff]
          %v1310 = vld [vmem:[#allocation4 + $0x28] sm:$0xff]
          %v1311 = vld [vmem:[#allocation4 + $0x30] sm:$0xff]
          %v1312 = vld [vmem:[#allocation4 + $0x38] sm:$0xff]
          %v1313 = vld [vmem:[#allocation4 + $0x40] sm:$0xff]
          %v1314 = vld [vmem:[#allocation4 + $0x48] sm:$0xff]
          %v1315 = vld [vmem:[#allocation4 + $0x50] sm:$0xff]
          %v1316 = vld [vmem:[#allocation4 + $0x58] sm:$0xff]
          %v1317 = vld [vmem:[#allocation4 + $0x60] sm:$0xff]
          %v1318 = vld [vmem:[#allocation4 + $0x68] sm:$0xff]
          %v1319 = vld [vmem:[#allocation4 + $0x70] sm:$0xff]
          %v1320 = vld [vmem:[#allocation4 + $0x78] sm:$0xff]
          %v1321 = vmul.f32 %v1146, %v1305
          %v1322 = vmul.f32 %v1148, %v1306
          %v1323 = vmul.f32 %v1150, %v1307
          %v1324 = vmul.f32 %v1152, %v1308
          %v1325 = vmul.f32 %v1154, %v1309
          %v1326 = vmul.f32 %v1156, %v1310
          %v1327 = vmul.f32 %v1158, %v1311
          %v1328 = vmul.f32 %v1160, %v1312
          %v1329 = vmul.f32 %v1162, %v1313
          %v1330 = vmul.f32 %v1164, %v1314
          %v1331 = vmul.f32 %v1166, %v1315
          %v1332 = vmul.f32 %v1168, %v1316
          %v1333 = vmul.f32 %v1170, %v1317
          %v1334 = vmul.f32 %v1172, %v1318
          %v1335 = vmul.f32 %v1174, %v1319
          %v1336 = vmul.f32 %v1176, %v1320
          %1337 = vadd.xlane.f32.xlu0 %v1274
          %v1338 = vpop.xlane.xlu0 %1337
          %1339 = vadd.xlane.f32.xlu0 %v1276
          %v1340 = vpop.xlane.xlu0 %1339
          %1341 = vadd.xlane.f32.xlu0 %v1278
          %v1342 = vpop.xlane.xlu0 %1341
          %1343 = vadd.xlane.f32.xlu0 %v1280
          %v1344 = vpop.xlane.xlu0 %1343
          %1345 = vadd.xlane.f32.xlu0 %v1282
          %v1346 = vpop.xlane.xlu0 %1345
          %1347 = vadd.xlane.f32.xlu0 %v1284
          %v1348 = vpop.xlane.xlu0 %1347
          %1349 = vadd.xlane.f32.xlu0 %v1286
          %v1350 = vpop.xlane.xlu0 %1349
          %1351 = vadd.xlane.f32.xlu0 %v1288
          %v1352 = vpop.xlane.xlu0 %1351
          %1353 = vadd.xlane.f32.xlu0 %v1290
          %v1354 = vpop.xlane.xlu0 %1353
          %1355 = vadd.xlane.f32.xlu0 %v1292
          %v1356 = vpop.xlane.xlu0 %1355
          %1357 = vadd.xlane.f32.xlu0 %v1294
          %v1358 = vpop.xlane.xlu0 %1357
          %1359 = vadd.xlane.f32.xlu0 %v1296
          %v1360 = vpop.xlane.xlu0 %1359
          %1361 = vadd.xlane.f32.xlu0 %v1298
          %v1362 = vpop.xlane.xlu0 %1361
          %1363 = vadd.xlane.f32.xlu0 %v1300
          %v1364 = vpop.xlane.xlu0 %1363
          %1365 = vadd.xlane.f32.xlu0 %v1302
          %v1366 = vpop.xlane.xlu0 %1365
          %1367 = vadd.xlane.f32.xlu0 %v1304
          %v1368 = vpop.xlane.xlu0 %1367
          %v1369 = vadd.f32 %v1321, %v1338
          %v1370 = vadd.f32 %v1322, %v1340
          %v1371 = vadd.f32 %v1323, %v1342
          %v1372 = vadd.f32 %v1324, %v1344
          %v1373 = vadd.f32 %v1325, %v1346
          %v1374 = vadd.f32 %v1326, %v1348
          %v1375 = vadd.f32 %v1327, %v1350
          %v1376 = vadd.f32 %v1328, %v1352
          %v1377 = vadd.f32 %v1329, %v1354
          %v1378 = vadd.f32 %v1330, %v1356
          %v1379 = vadd.f32 %v1331, %v1358
          %v1380 = vadd.f32 %v1332, %v1360
          %v1381 = vadd.f32 %v1333, %v1362
          %v1382 = vadd.f32 %v1334, %v1364
          %v1383 = vadd.f32 %v1335, %v1366
          %v1384 = vadd.f32 %v1336, %v1368
          %vm1385 = vcmask 7168
          %1386 = vst.msk [vmem:[#allocation4] sm:$0xff] %vm1385, %v1369
          %1387 = vst.msk [vmem:[#allocation4 + $0x8] sm:$0xff] %vm1385, %v1370
          %1388 = vst.msk [vmem:[#allocation4 + $0x10] sm:$0xff] %vm1385, %v1371
          %1389 = vst.msk [vmem:[#allocation4 + $0x18] sm:$0xff] %vm1385, %v1372
          %1390 = vst.msk [vmem:[#allocation4 + $0x20] sm:$0xff] %vm1385, %v1373
          %1391 = vst.msk [vmem:[#allocation4 + $0x28] sm:$0xff] %vm1385, %v1374
          %1392 = vst.msk [vmem:[#allocation4 + $0x30] sm:$0xff] %vm1385, %v1375
          %1393 = vst.msk [vmem:[#allocation4 + $0x38] sm:$0xff] %vm1385, %v1376
          %1394 = vst.msk [vmem:[#allocation4 + $0x40] sm:$0xff] %vm1385, %v1377
          %1395 = vst.msk [vmem:[#allocation4 + $0x48] sm:$0xff] %vm1385, %v1378
          %1396 = vst.msk [vmem:[#allocation4 + $0x50] sm:$0xff] %vm1385, %v1379
          %1397 = vst.msk [vmem:[#allocation4 + $0x58] sm:$0xff] %vm1385, %v1380
          %1398 = vst.msk [vmem:[#allocation4 + $0x60] sm:$0xff] %vm1385, %v1381
          %1399 = vst.msk [vmem:[#allocation4 + $0x68] sm:$0xff] %vm1385, %v1382
          %1400 = vst.msk [vmem:[#allocation4 + $0x70] sm:$0xff] %vm1385, %v1383
          %1401 = vst.msk [vmem:[#allocation4 + $0x78] sm:$0xff] %vm1385, %v1384
          %v1402 = vld [vmem:[#allocation5] sm:$0xff]
          %v1403 = vld [vmem:[#allocation5 + $0x8] sm:$0xff]
          %v1404 = vld [vmem:[#allocation5 + $0x10] sm:$0xff]
          %v1405 = vld [vmem:[#allocation5 + $0x18] sm:$0xff]
          %v1406 = vld [vmem:[#allocation5 + $0x20] sm:$0xff]
          %v1407 = vld [vmem:[#allocation5 + $0x28] sm:$0xff]
          %v1408 = vld [vmem:[#allocation5 + $0x30] sm:$0xff]
          %v1409 = vld [vmem:[#allocation5 + $0x38] sm:$0xff]
          %v1410 = vld [vmem:[#allocation5 + $0x40] sm:$0xff]
          %v1411 = vld [vmem:[#allocation5 + $0x48] sm:$0xff]
          %v1412 = vld [vmem:[#allocation5 + $0x50] sm:$0xff]
          %v1413 = vld [vmem:[#allocation5 + $0x58] sm:$0xff]
          %v1414 = vld [vmem:[#allocation5 + $0x60] sm:$0xff]
          %v1415 = vld [vmem:[#allocation5 + $0x68] sm:$0xff]
          %v1416 = vld [vmem:[#allocation5 + $0x70] sm:$0xff]
          %v1417 = vld [vmem:[#allocation5 + $0x78] sm:$0xff]
          %1419 = vset.pattern.permute.xlu0 0
          %1420 = vperm.xlu0 %1419, %v1146
          %v1421 = vpop.permute.xlu0 %1420
          %1424 = vset.pattern.permute.xlu0 0
          %1425 = vperm.xlu0 %1424, %v1148
          %v1426 = vpop.permute.xlu0 %1425
          %1429 = vset.pattern.permute.xlu0 0
          %1430 = vperm.xlu0 %1429, %v1150
          %v1431 = vpop.permute.xlu0 %1430
          %1434 = vset.pattern.permute.xlu0 0
          %1435 = vperm.xlu0 %1434, %v1152
          %v1436 = vpop.permute.xlu0 %1435
          %1439 = vset.pattern.permute.xlu0 0
          %1440 = vperm.xlu0 %1439, %v1154
          %v1441 = vpop.permute.xlu0 %1440
          %1444 = vset.pattern.permute.xlu0 0
          %1445 = vperm.xlu0 %1444, %v1156
          %v1446 = vpop.permute.xlu0 %1445
          %1449 = vset.pattern.permute.xlu0 0
          %1450 = vperm.xlu0 %1449, %v1158
          %v1451 = vpop.permute.xlu0 %1450
          %1454 = vset.pattern.permute.xlu0 0
          %1455 = vperm.xlu0 %1454, %v1160
          %v1456 = vpop.permute.xlu0 %1455
          %1459 = vset.pattern.permute.xlu0 0
          %1460 = vperm.xlu0 %1459, %v1162
          %v1461 = vpop.permute.xlu0 %1460
          %1464 = vset.pattern.permute.xlu0 0
          %1465 = vperm.xlu0 %1464, %v1164
          %v1466 = vpop.permute.xlu0 %1465
          %1469 = vset.pattern.permute.xlu0 0
          %1470 = vperm.xlu0 %1469, %v1166
          %v1471 = vpop.permute.xlu0 %1470
          %1474 = vset.pattern.permute.xlu0 0
          %1475 = vperm.xlu0 %1474, %v1168
          %v1476 = vpop.permute.xlu0 %1475
          %1479 = vset.pattern.permute.xlu0 0
          %1480 = vperm.xlu0 %1479, %v1170
          %v1481 = vpop.permute.xlu0 %1480
          %1484 = vset.pattern.permute.xlu0 0
          %1485 = vperm.xlu0 %1484, %v1172
          %v1486 = vpop.permute.xlu0 %1485
          %1489 = vset.pattern.permute.xlu0 0
          %1490 = vperm.xlu0 %1489, %v1174
          %v1491 = vpop.permute.xlu0 %1490
          %1494 = vset.pattern.permute.xlu0 0
          %1495 = vperm.xlu0 %1494, %v1176
          %v1496 = vpop.permute.xlu0 %1495
          %v1498 = vmul.f32 %v1421, %v1402
          %v1499 = vmul.f32 %v1426, %v1403
          %v1500 = vmul.f32 %v1431, %v1404
          %v1501 = vmul.f32 %v1436, %v1405
          %v1502 = vmul.f32 %v1441, %v1406
          %v1503 = vmul.f32 %v1446, %v1407
          %v1504 = vmul.f32 %v1451, %v1408
          %v1505 = vmul.f32 %v1456, %v1409
          %v1506 = vmul.f32 %v1461, %v1410
          %v1507 = vmul.f32 %v1466, %v1411
          %v1508 = vmul.f32 %v1471, %v1412
          %v1509 = vmul.f32 %v1476, %v1413
          %v1510 = vmul.f32 %v1481, %v1414
          %v1511 = vmul.f32 %v1486, %v1415
          %v1512 = vmul.f32 %v1491, %v1416
          %v1513 = vmul.f32 %v1496, %v1417
          %v1514 = vpack.c.bf16 %v1276, %v1274
          %v1515 = vpack.c.bf16 %v1280, %v1278
          %v1516 = vpack.c.bf16 %v1284, %v1282
          %v1517 = vpack.c.bf16 %v1288, %v1286
          %v1518 = vpack.c.bf16 %v1292, %v1290
          %v1519 = vpack.c.bf16 %v1296, %v1294
          %v1520 = vpack.c.bf16 %v1300, %v1298
          %v1521 = vpack.c.bf16 %v1304, %v1302
          %1522 = vmatpush.bf16.msra.mxu0 %v880
          %1523 = vmatpush.bf16.msra.mxu0 %v879
          %1524 = vmatpush.bf16.msra.mxu0 %v878
          %1525 = vmatpush.bf16.msra.mxu0 %v877
          %1526 = vmatpush.bf16.msra.mxu0 %v876
          %1527 = vmatpush.bf16.msra.mxu0 %v875
          %1528 = vmatpush.bf16.msra.mxu0 %v874
          %1529 = vmatpush.bf16.msra.mxu0 %v873
          %1530 = vmatmul.bf16.gmra.mxu0 %v1514
          %v1531 = vpop.f32.mrf.mxu0
          %v1532 = vadd.f32 0.0, %v1531
          %v1533 = vpop.f32.mrf.mxu0
          %v1534 = vadd.f32 0.0, %v1533
          %1535 = vmatmul.bf16.gmra.mxu0 %v1515
          %v1536 = vpop.f32.mrf.mxu0
          %v1537 = vadd.f32 0.0, %v1536
          %v1538 = vpop.f32.mrf.mxu0
          %v1539 = vadd.f32 0.0, %v1538
          %1540 = vmatmul.bf16.gmra.mxu0 %v1516
          %v1541 = vpop.f32.mrf.mxu0
          %v1542 = vadd.f32 0.0, %v1541
          %v1543 = vpop.f32.mrf.mxu0
          %v1544 = vadd.f32 0.0, %v1543
          %1545 = vmatmul.bf16.gmra.mxu0 %v1517
          %v1546 = vpop.f32.mrf.mxu0
          %v1547 = vadd.f32 0.0, %v1546
          %v1548 = vpop.f32.mrf.mxu0
          %v1549 = vadd.f32 0.0, %v1548
          %1550 = vmatmul.bf16.gmra.mxu0 %v1518
          %v1551 = vpop.f32.mrf.mxu0
          %v1552 = vadd.f32 0.0, %v1551
          %v1553 = vpop.f32.mrf.mxu0
          %v1554 = vadd.f32 0.0, %v1553
          %1555 = vmatmul.bf16.gmra.mxu0 %v1519
          %v1556 = vpop.f32.mrf.mxu0
          %v1557 = vadd.f32 0.0, %v1556
          %v1558 = vpop.f32.mrf.mxu0
          %v1559 = vadd.f32 0.0, %v1558
          %1560 = vmatmul.bf16.gmra.mxu0 %v1520
          %v1561 = vpop.f32.mrf.mxu0
          %v1562 = vadd.f32 0.0, %v1561
          %v1563 = vpop.f32.mrf.mxu0
          %v1564 = vadd.f32 0.0, %v1563
          %1565 = vmatmul.bf16.gmra.mxu0 %v1521
          %v1566 = vpop.f32.mrf.mxu0
          %v1567 = vadd.f32 0.0, %v1566
          %v1568 = vpop.f32.mrf.mxu0
          %v1569 = vadd.f32 0.0, %v1568
          %1570 = vdwg.mxu0
          %v1571 = vadd.f32 %v1498, %v1532
          %v1572 = vadd.f32 %v1499, %v1534
          %v1573 = vadd.f32 %v1500, %v1537
          %v1574 = vadd.f32 %v1501, %v1539
          %v1575 = vadd.f32 %v1502, %v1542
          %v1576 = vadd.f32 %v1503, %v1544
          %v1577 = vadd.f32 %v1504, %v1547
          %v1578 = vadd.f32 %v1505, %v1549
          %v1579 = vadd.f32 %v1506, %v1552
          %v1580 = vadd.f32 %v1507, %v1554
          %v1581 = vadd.f32 %v1508, %v1557
          %v1582 = vadd.f32 %v1509, %v1559
          %v1583 = vadd.f32 %v1510, %v1562
          %v1584 = vadd.f32 %v1511, %v1564
          %v1585 = vadd.f32 %v1512, %v1567
          %v1586 = vadd.f32 %v1513, %v1569
          %1587 = vst [vmem:[#allocation5] sm:$0xff] %v1571
          %1588 = vst [vmem:[#allocation5 + $0x8] sm:$0xff] %v1572
          %1589 = vst [vmem:[#allocation5 + $0x10] sm:$0xff] %v1573
          %1590 = vst [vmem:[#allocation5 + $0x18] sm:$0xff] %v1574
          %1591 = vst [vmem:[#allocation5 + $0x20] sm:$0xff] %v1575
          %1592 = vst [vmem:[#allocation5 + $0x28] sm:$0xff] %v1576
          %1593 = vst [vmem:[#allocation5 + $0x30] sm:$0xff] %v1577
          %1594 = vst [vmem:[#allocation5 + $0x38] sm:$0xff] %v1578
          %1595 = vst [vmem:[#allocation5 + $0x40] sm:$0xff] %v1579
          %1596 = vst [vmem:[#allocation5 + $0x48] sm:$0xff] %v1580
          %1597 = vst [vmem:[#allocation5 + $0x50] sm:$0xff] %v1581
          %1598 = vst [vmem:[#allocation5 + $0x58] sm:$0xff] %v1582
          %1599 = vst [vmem:[#allocation5 + $0x60] sm:$0xff] %v1583
          %1600 = vst [vmem:[#allocation5 + $0x68] sm:$0xff] %v1584
          %1601 = vst [vmem:[#allocation5 + $0x70] sm:$0xff] %v1585
          %1602 = vst [vmem:[#allocation5 + $0x78] sm:$0xff] %v1586
          %1603 = vst.msk [vmem:[#allocation3] sm:$0xff] %vm1385, %v1113
          %1604 = vst.msk [vmem:[#allocation3 + $0x8] sm:$0xff] %vm1385, %v1114
          %1605 = vst.msk [vmem:[#allocation3 + $0x10] sm:$0xff] %vm1385, %v1115
          %1606 = vst.msk [vmem:[#allocation3 + $0x18] sm:$0xff] %vm1385, %v1116
          %1607 = vst.msk [vmem:[#allocation3 + $0x20] sm:$0xff] %vm1385, %v1117
          %1608 = vst.msk [vmem:[#allocation3 + $0x28] sm:$0xff] %vm1385, %v1118
          %1609 = vst.msk [vmem:[#allocation3 + $0x30] sm:$0xff] %vm1385, %v1119
          %1610 = vst.msk [vmem:[#allocation3 + $0x38] sm:$0xff] %vm1385, %v1120
          %1611 = vst.msk [vmem:[#allocation3 + $0x40] sm:$0xff] %vm1385, %v1121
          %1612 = vst.msk [vmem:[#allocation3 + $0x48] sm:$0xff] %vm1385, %v1122
          %1613 = vst.msk [vmem:[#allocation3 + $0x50] sm:$0xff] %vm1385, %v1123
          %1614 = vst.msk [vmem:[#allocation3 + $0x58] sm:$0xff] %vm1385, %v1124
          %1615 = vst.msk [vmem:[#allocation3 + $0x60] sm:$0xff] %vm1385, %v1125
          %1616 = vst.msk [vmem:[#allocation3 + $0x68] sm:$0xff] %vm1385, %v1126
          %1617 = vst.msk [vmem:[#allocation3 + $0x70] sm:$0xff] %vm1385, %v1127
          %1618 = vst.msk [vmem:[#allocation3 + $0x78] sm:$0xff] %vm1385, %v1128
          // Predicated region
          $region61: #{tpu_custom_call.1} parent=59 // pred_check
            %p1619 = pneg %p1013
          $region62: #{tpu_custom_call.1} parent=59 // pred_check_branch
            %1621 = sbr.rel (%p1619) target = $region64
          $region63: #{tpu_custom_call.1} parent=59 // pred_region
            %v1622 = vld [vmem:[#allocation4] sm:$0xff]
            %v1623 = vld [vmem:[#allocation4 + $0x8] sm:$0xff]
            %v1624 = vld [vmem:[#allocation4 + $0x10] sm:$0xff]
            %v1625 = vld [vmem:[#allocation4 + $0x18] sm:$0xff]
            %v1626 = vld [vmem:[#allocation4 + $0x20] sm:$0xff]
            %v1627 = vld [vmem:[#allocation4 + $0x28] sm:$0xff]
            %v1628 = vld [vmem:[#allocation4 + $0x30] sm:$0xff]
            %v1629 = vld [vmem:[#allocation4 + $0x38] sm:$0xff]
            %v1630 = vld [vmem:[#allocation4 + $0x40] sm:$0xff]
            %v1631 = vld [vmem:[#allocation4 + $0x48] sm:$0xff]
            %v1632 = vld [vmem:[#allocation4 + $0x50] sm:$0xff]
            %v1633 = vld [vmem:[#allocation4 + $0x58] sm:$0xff]
            %v1634 = vld [vmem:[#allocation4 + $0x60] sm:$0xff]
            %v1635 = vld [vmem:[#allocation4 + $0x68] sm:$0xff]
            %v1636 = vld [vmem:[#allocation4 + $0x70] sm:$0xff]
            %v1637 = vld [vmem:[#allocation4 + $0x78] sm:$0xff]
            %v1638 = vrcp.pop %v1622
            %v1639 = vrcp.pop %v1623
            %v1640 = vrcp.pop %v1624
            %v1641 = vrcp.pop %v1625
            %v1642 = vrcp.pop %v1626
            %v1643 = vrcp.pop %v1627
            %v1644 = vrcp.pop %v1628
            %v1645 = vrcp.pop %v1629
            %v1646 = vrcp.pop %v1630
            %v1647 = vrcp.pop %v1631
            %v1648 = vrcp.pop %v1632
            %v1649 = vrcp.pop %v1633
            %v1650 = vrcp.pop %v1634
            %v1651 = vrcp.pop %v1635
            %v1652 = vrcp.pop %v1636
            %v1653 = vrcp.pop %v1637
            %v1654 = vld [vmem:[#allocation5] sm:$0xff]
            %v1655 = vld [vmem:[#allocation5 + $0x8] sm:$0xff]
            %v1656 = vld [vmem:[#allocation5 + $0x10] sm:$0xff]
            %v1657 = vld [vmem:[#allocation5 + $0x18] sm:$0xff]
            %v1658 = vld [vmem:[#allocation5 + $0x20] sm:$0xff]
            %v1659 = vld [vmem:[#allocation5 + $0x28] sm:$0xff]
            %v1660 = vld [vmem:[#allocation5 + $0x30] sm:$0xff]
            %v1661 = vld [vmem:[#allocation5 + $0x38] sm:$0xff]
            %v1662 = vld [vmem:[#allocation5 + $0x40] sm:$0xff]
            %v1663 = vld [vmem:[#allocation5 + $0x48] sm:$0xff]
            %v1664 = vld [vmem:[#allocation5 + $0x50] sm:$0xff]
            %v1665 = vld [vmem:[#allocation5 + $0x58] sm:$0xff]
            %v1666 = vld [vmem:[#allocation5 + $0x60] sm:$0xff]
            %v1667 = vld [vmem:[#allocation5 + $0x68] sm:$0xff]
            %v1668 = vld [vmem:[#allocation5 + $0x70] sm:$0xff]
            %v1669 = vld [vmem:[#allocation5 + $0x78] sm:$0xff]
            %1671 = vset.pattern.permute.xlu0 0
            %1672 = vperm.xlu0 %1671, %v1638
            %v1673 = vpop.permute.xlu0 %1672
            %1676 = vset.pattern.permute.xlu0 0
            %1677 = vperm.xlu0 %1676, %v1639
            %v1678 = vpop.permute.xlu0 %1677
            %1681 = vset.pattern.permute.xlu0 0
            %1682 = vperm.xlu0 %1681, %v1640
            %v1683 = vpop.permute.xlu0 %1682
            %1686 = vset.pattern.permute.xlu0 0
            %1687 = vperm.xlu0 %1686, %v1641
            %v1688 = vpop.permute.xlu0 %1687
            %1691 = vset.pattern.permute.xlu0 0
            %1692 = vperm.xlu0 %1691, %v1642
            %v1693 = vpop.permute.xlu0 %1692
            %1696 = vset.pattern.permute.xlu0 0
            %1697 = vperm.xlu0 %1696, %v1643
            %v1698 = vpop.permute.xlu0 %1697
            %1701 = vset.pattern.permute.xlu0 0
            %1702 = vperm.xlu0 %1701, %v1644
            %v1703 = vpop.permute.xlu0 %1702
            %1706 = vset.pattern.permute.xlu0 0
            %1707 = vperm.xlu0 %1706, %v1645
            %v1708 = vpop.permute.xlu0 %1707
            %1711 = vset.pattern.permute.xlu0 0
            %1712 = vperm.xlu0 %1711, %v1646
            %v1713 = vpop.permute.xlu0 %1712
            %1716 = vset.pattern.permute.xlu0 0
            %1717 = vperm.xlu0 %1716, %v1647
            %v1718 = vpop.permute.xlu0 %1717
            %1721 = vset.pattern.permute.xlu0 0
            %1722 = vperm.xlu0 %1721, %v1648
            %v1723 = vpop.permute.xlu0 %1722
            %1726 = vset.pattern.permute.xlu0 0
            %1727 = vperm.xlu0 %1726, %v1649
            %v1728 = vpop.permute.xlu0 %1727
            %1731 = vset.pattern.permute.xlu0 0
            %1732 = vperm.xlu0 %1731, %v1650
            %v1733 = vpop.permute.xlu0 %1732
            %1736 = vset.pattern.permute.xlu0 0
            %1737 = vperm.xlu0 %1736, %v1651
            %v1738 = vpop.permute.xlu0 %1737
            %1741 = vset.pattern.permute.xlu0 0
            %1742 = vperm.xlu0 %1741, %v1652
            %v1743 = vpop.permute.xlu0 %1742
            %1746 = vset.pattern.permute.xlu0 0
            %1747 = vperm.xlu0 %1746, %v1653
            %v1748 = vpop.permute.xlu0 %1747
            %v1750 = vmul.f32 %v1654, %v1673
            %v1751 = vmul.f32 %v1655, %v1678
            %v1752 = vmul.f32 %v1656, %v1683
            %v1753 = vmul.f32 %v1657, %v1688
            %v1754 = vmul.f32 %v1658, %v1693
            %v1755 = vmul.f32 %v1659, %v1698
            %v1756 = vmul.f32 %v1660, %v1703
            %v1757 = vmul.f32 %v1661, %v1708
            %v1758 = vmul.f32 %v1662, %v1713
            %v1759 = vmul.f32 %v1663, %v1718
            %v1760 = vmul.f32 %v1664, %v1723
            %v1761 = vmul.f32 %v1665, %v1728
            %v1762 = vmul.f32 %v1666, %v1733
            %v1763 = vmul.f32 %v1667, %v1738
            %v1764 = vmul.f32 %v1668, %v1743
            %v1765 = vmul.f32 %v1669, %v1748
            %1766 = vst [vmem:[%s321] sm:$0xff] %v1750
            %1767 = vst [vmem:[%s321 + $0x8] sm:$0xff] %v1751
            %1768 = vst [vmem:[%s321 + $0x10] sm:$0xff] %v1752
            %1769 = vst [vmem:[%s321 + $0x18] sm:$0xff] %v1753
            %1770 = vst [vmem:[%s321 + $0x20] sm:$0xff] %v1754
            %1771 = vst [vmem:[%s321 + $0x28] sm:$0xff] %v1755
            %1772 = vst [vmem:[%s321 + $0x30] sm:$0xff] %v1756
            %1773 = vst [vmem:[%s321 + $0x38] sm:$0xff] %v1757
            %1774 = vst [vmem:[%s321 + $0x40] sm:$0xff] %v1758
            %1775 = vst [vmem:[%s321 + $0x48] sm:$0xff] %v1759
            %1776 = vst [vmem:[%s321 + $0x50] sm:$0xff] %v1760
            %1777 = vst [vmem:[%s321 + $0x58] sm:$0xff] %v1761
            %1778 = vst [vmem:[%s321 + $0x60] sm:$0xff] %v1762
            %1779 = vst [vmem:[%s321 + $0x68] sm:$0xff] %v1763
            %1780 = vst [vmem:[%s321 + $0x70] sm:$0xff] %v1764
            %1781 = vst [vmem:[%s321 + $0x78] sm:$0xff] %v1765
          $region64: #{tpu_custom_call.1} parent=59 // pred_fallthru
            _
        $region60: #{tpu_custom_call.1} parent=35 // pred_fallthru
          _
        %s1782 = sand.u32 %s152, 1
        %s1783 = scalar_lea.sflag [#allocation8], %s1782
        %s1784 = sand.u32 %s152, 1
        %s1785 = smul.addr %s1784, 128
        %s1786 = scalar_lea.vmem [#allocation14], %s1785
        // Predicated region
        $region65: #{tpu_custom_call.1} parent=35 // pred_check
          %p1787 = pneg %p162
        $region66: #{tpu_custom_call.1} parent=35 // pred_check_branch
          %1789 = sbr.rel (%p1787) target = $region68
        $region67: #{tpu_custom_call.1} parent=35 // pred_region
          %s1790 = smul.u32 16, %s31
          %1792 = vsyncadd %s1783, 0
          %s1793 = smul.addr %s30, 16
          %s1794 = sadd.s32 %s1790, %s1793
          %s1795 = smul.addr %s1794, 8
          %s1796 = scalar_lea.hbm %s4, %s1795
          %s1797 = sshll.u32 %s1786, 4
          %s1798 = int_to_ptr.vmem [resolvable:$true] %s1797
          %s1799 = sshll.u32 %s1796, 4
          %s1800 = int_to_ptr.hbm [resolvable:$true] %s1799
          %1805 = dma.vmem_to_hbm [thread:$0]  %s1798, 2048, %s1800, %s1783, 128, 128, 8
        $region68: #{tpu_custom_call.1} parent=35 // pred_fallthru
          _
      $region36: #{tpu_custom_call.1} parent=5 // pred_fallthru
        _
      %p1806 = scmp.le.s32.totalorder 2, %s20
      // Predicated region
      $region69: #{tpu_custom_call.1} parent=5 // pred_check
        %p1807 = pneg %p1806
      $region70: #{tpu_custom_call.1} parent=5 // pred_check_branch
        %1809 = sbr.rel (%p1807) target = $region72
      $region71: #{tpu_custom_call.1} parent=5 // pred_region
        %s1810 = ssub.s32 %s20, 2
        // Predicated region
        $region73: #{tpu_custom_call.1} parent=71 // pred_check
          %p1811 = pneg %p168
        $region74: #{tpu_custom_call.1} parent=71 // pred_check_branch
          %1813 = sbr.rel (%p1811) target = $region76
        $region75: #{tpu_custom_call.1} parent=71 // pred_region
          %s1814 = sand.u32 %s153, 1
          %s1815 = scalar_lea.sflag [#allocation8], %s1814
          %s1816 = sand.u32 %s153, 1
          %s1817 = smul.addr %s1816, 128
          %s1818 = scalar_lea.vmem [#allocation14], %s1817
          %1820 = dma.done %s1815, 2048
        $region76: #{tpu_custom_call.1} parent=71 // pred_fallthru
          _
      $region72: #{tpu_custom_call.1} parent=5 // pred_fallthru
        _
    $region6: #{tpu_custom_call.1} parent=1 // loop_footer
      %s24 = sadd.s32 1, %s20
    $region7: #{tpu_custom_call.1} parent=1 // loop_footer_branch
      %19 = sbr.rel target = $region3
    $region8: #{tpu_custom_call.1} parent=1 // loop_exit
      _
    %1821 = vsyncpa [#allocation7], 1
    %s1822 = scalar_lea.sflag [#allocation7], 1
    %1823 = vsyncpa %s1822, 1
    %1824 = vsyncpa [#allocation10], 1
    %s1825 = scalar_lea.sflag [#allocation10], 1
    %1826 = vsyncpa %s1825, 1
    %1827 = vsyncpa [#allocation13], 1
    %1828 = vsyncpa [#allocation8], 1
    %s1829 = scalar_lea.sflag [#allocation8], 1
    %1830 = vsyncpa %s1829, 1

</llo_original>
